<compile_context>
chip_gen: v6e
topology: v6e:2x2x1
jax: 0.10.0
libtpu: 0.0.40
codegen_flags: <defaults>
</compile_context>

<pallas_src>
import jax
import jax.numpy as jnp
from jax.experimental import pallas as pl
from jax.experimental.pallas import tpu as pltpu

IN_FEATURES = 6
OUT_FEATURES = 1
LANE = 128                       # batch rows folded into one lane-dense flat row
FLAT_K = IN_FEATURES * LANE      # 768: flattened contraction width
PAD_ROWS = LANE * 8              # 1024: keeps flat-row count sublane-aligned
MAX_TILE_ROWS = 2048             # flat rows per grid step (= 262,144 batch rows)


def linear_kernel(x_ref, wmat_ref, b_ref, o_ref):
    # x_ref   : (tr, 768)  VMEM  -- 128 batch rows interleaved per flat row
    # wmat_ref: (768, 128) VMEM  -- block-diagonal select*weight matrix (resident)
    # b_ref   : (1,)       SMEM  -- scalar bias
    # o_ref   : (tr, 128)  VMEM  -- lane-dense output (unmasked stores)
    acc = jnp.dot(
        x_ref[...],
        wmat_ref[...],
        preferred_element_type=jnp.float32,
        precision=jax.lax.Precision.HIGHEST,
    )
    o_ref[...] = (acc + b_ref[0]).astype(o_ref.dtype)


def _build_wmat(weight, dtype):
    """Wmat[6*r + k, r] = weight[0, k]; zero elsewhere.  Shape (768, 128)."""
    w = weight.reshape(IN_FEATURES).astype(dtype)
    eye = jnp.eye(LANE, dtype=dtype)                       # (128, 128)
    wmat = w[None, :, None] * eye[:, None, :]              # (128, 6, 128)
    return wmat.reshape(FLAT_K, LANE)                      # ~384 KiB


@jax.jit
def linear_forward(x, weight, bias):
    """x: (B, 6) f32; weight: (1, 6) f32 (PyTorch layout); bias: (1,) f32.

    Returns (B, 1), matching nn.Linear(6, 1).
    """
    B, in_f = x.shape
    assert in_f == IN_FEATURES and weight.shape == (OUT_FEATURES, IN_FEATURES)
    dtype = x.dtype

    # Pad the batch so the row-major flatten below is exact and every matmul
    # M-dim is sublane-aligned.  Only non-1024-multiple batches pay this copy.
    B_pad = -(-B // PAD_ROWS) * PAD_ROWS
    if B_pad != B:
        x = jnp.pad(x, ((0, B_pad - B), (0, 0)))
    R = B_pad // LANE                                      # flat rows, multiple of 8

    # Free view of the same row-major bytes: (B_pad, 6) -> (R, 768).
    x_flat = x.reshape(R, FLAT_K)

    wmat = _build_wmat(weight, dtype)                      # (768, 128)
    b = bias.reshape(OUT_FEATURES).astype(dtype)           # (1,) -> SMEM scalar

    tr = R if R <= MAX_TILE_ROWS else MAX_TILE_ROWS        # always a multiple of 8
    grid = (pl.cdiv(R, tr),)                               # masked tail block if ragged

    out_flat = pl.pallas_call(
        linear_kernel,
        out_shape=jax.ShapeDtypeStruct((R, LANE), dtype),
        grid=grid,
        in_specs=[
            pl.BlockSpec((tr, FLAT_K), lambda i: (i, 0)),
            pl.BlockSpec((FLAT_K, LANE), lambda i: (0, 0)),   # fetched once, resident
            pl.BlockSpec(memory_space=pltpu.MemorySpace.SMEM),
        ],
        out_specs=pl.BlockSpec((tr, LANE), lambda i: (i, 0)),
        compiler_params=pltpu.CompilerParams(
            dimension_semantics=("parallel",),   # shard batch across v7x's 2 TCs
            vmem_limit_bytes=32 * 1024 * 1024,   # explicit; working set ~16 MiB
        ),
    )(x_flat, wmat, b)

    # (R, 128) row-major is bit-identical to (B_pad, 1): free reshape, then
    # drop any batch padding.
    out = out_flat.reshape(B_pad, OUT_FEATURES)
    if B_pad != B:
        out = out[:B]
    return out


if __name__ == "__main__":
    key = jax.random.PRNGKey(0)
    kx, kw, kb = jax.random.split(key, 3)

    # Module-spec parameters: nn.init.constant_(weight, 0.0), constant_(bias, 0.0).
    weight = jnp.zeros((OUT_FEATURES, IN_FEATURES), dtype=jnp.float32)
    bias = jnp.zeros((OUT_FEATURES,), dtype=jnp.float32)

    # Example input consistent with Linear(6, 1): batch=8, features=6.
    x = jax.random.normal(kx, (8, IN_FEATURES), dtype=jnp.float32)

    out = jax.block_until_ready(linear_forward(x, weight, bias))
    assert out.shape == (8, OUT_FEATURES)
    assert jnp.allclose(out, jnp.zeros((8, OUT_FEATURES), jnp.float32), atol=1e-6)

    # Non-degenerate parameters to validate the kernel math.  Reference is an
    # elementwise f32 sum (no XLA matmul-precision truncation).
    w2 = jax.random.normal(kw, (OUT_FEATURES, IN_FEATURES), dtype=jnp.float32)
    b2 = jax.random.normal(kb, (OUT_FEATURES,), dtype=jnp.float32)
    out2 = jax.block_until_ready(linear_forward(x, w2, b2))
    exp2 = jnp.sum(x * w2[0], axis=-1, keepdims=True) + b2[0]
    assert out2.shape == (8, OUT_FEATURES)
    assert jnp.allclose(out2, exp2, atol=1e-4, rtol=1e-4)

    # Also exercise a larger batch hitting the same single-tile path with a
    # bigger M, plus padding (1024-aligned internally).
    x3 = jax.random.normal(kb, (256, IN_FEATURES), dtype=jnp.float32)
    out3 = jax.block_until_ready(linear_forward(x3, w2, b2))
    exp3 = jnp.sum(x3 * w2[0], axis=-1, keepdims=True) + b2[0]
    assert out3.shape == (256, OUT_FEATURES)
    assert jnp.allclose(out3, exp3, atol=1e-4, rtol=1e-4)

    print("KERNEL_OK")
</pallas_src>

<mosaic_0001>
module attributes {stable_mosaic.version = 11 : i64} {
  func.func @linear_kernel(%arg0: i32, %arg1: memref<8x768xf32, #tpu.memory_space<vmem>>, %arg2: memref<768x128xf32, #tpu.memory_space<vmem>>, %arg3: memref<1xf32, #tpu.memory_space<smem>>, %arg4: memref<8x128xf32, #tpu.memory_space<vmem>>) attributes {dimension_semantics = [#tpu.dimension_semantics<parallel>], iteration_bounds = array<i64: 1>, scalar_prefetch = 0 : i64, scratch_operands = 0 : i64, tpu.core_type = #tpu.core_type<tc>, window_params = [{transform_indices = @transform_0, window_bounds = array<i64: 8, 768>}, {pipeline_mode = #tpu.pipeline_mode<synchronous>, transform_indices = @transform_1, window_bounds = array<i64: 768, 128>}, {transform_indices = @transform_2, window_bounds = array<i64: 1>}, {transform_indices = @transform_3, window_bounds = array<i64: 8, 128>}]} {
    %c0 = arith.constant 0 : index
    %c0_0 = arith.constant 0 : index
    %0 = vector.load %arg1[%c0, %c0_0] : memref<8x768xf32, #tpu.memory_space<vmem>>, vector<8x768xf32>
    %c0_1 = arith.constant 0 : index
    %c0_2 = arith.constant 0 : index
    %1 = vector.load %arg2[%c0_1, %c0_2] : memref<768x128xf32, #tpu.memory_space<vmem>>, vector<768x128xf32>
    %cst = arith.constant dense<0.000000e+00> : vector<8x128xf32>
    %2 = tpu.matmul %0, %1, %cst {dimension_numbers = #tpu.dot_dimension_numbers<[1], [0], [0], [1], [0, 0, 1, 1], [], []>, precision = #tpu.contract_precision<fp32>} : vector<8x768xf32>, vector<768x128xf32>, vector<8x128xf32> -> vector<8x128xf32>
    %c0_3 = arith.constant 0 : index
    %3 = memref.load %arg3[%c0_3] : memref<1xf32, #tpu.memory_space<smem>>
    %4 = vector.broadcast %3 : f32 to vector<8x128xf32>
    %5 = arith.addf %2, %4 : vector<8x128xf32>
    %c0_4 = arith.constant 0 : index
    %c0_5 = arith.constant 0 : index
    %6 = vector.load %arg4[%c0_4, %c0_5] : memref<8x128xf32, #tpu.memory_space<vmem>>, vector<8x128xf32>
    tpu.vector_store %arg4[%c0_4, %c0_5], %5 {strides = array<i32>} : memref<8x128xf32, #tpu.memory_space<vmem>>, vector<8x128xf32>,
    return
  }
  func.func @transform_0(%arg0: i32) -> (i32, i32) {
    %c0_i32 = arith.constant 0 : i32
    %c0_i32_0 = arith.constant 0 : i32
    return %arg0, %c0_i32 : i32, i32
  }
  func.func @transform_1(%arg0: i32) -> (i32, i32) {
    %c0_i32 = arith.constant 0 : i32
    %c0_i32_0 = arith.constant 0 : i32
    %c0_i32_1 = arith.constant 0 : i32
    return %c0_i32, %c0_i32_0 : i32, i32
  }
  func.func @transform_2(%arg0: i32) -> i32 {
    %c0_i32 = arith.constant 0 : i32
    %c0_i32_0 = arith.constant 0 : i32
    return %c0_i32 : i32
  }
  func.func @transform_3(%arg0: i32) -> (i32, i32) {
    %c0_i32 = arith.constant 0 : i32
    %c0_i32_0 = arith.constant 0 : i32
    return %arg0, %c0_i32 : i32, i32
  }
}

</mosaic_0001>

<llo_original>
// kernel: linear_forward.1
$region0: #{linear_forward.1}
  #allocation0 [shape = 'u32[]', space=smem, size = 0x4, offset = 0x4, fixed_abs, tag = 'smem constant byte address 0x4 - core index']
  #allocation1 [shape = 'u32[144,128]{1,0:T(1,128)}', space=vmem, size = 0x12000, scoped, tag = 'internal scratch']
  #allocation2 [shape = 'f32[1]{0:T(128)S(6)}', space=smem, size = 0x200, scoped, tag = 'scoped memory for linear_forward.1']
  %s0 = inlined_call_operand.vmem [shape: f32[8,768], index: 0, kind: input, shape index: {}]
  %s1 = inlined_call_operand.vmem [shape: f32[768,128], index: 1, kind: input, shape index: {}]
  %s2 = inlined_call_operand.<no memory space> [shape: f32[1], index: 2, kind: input, shape index: {}]
  %s3 = inlined_call_operand.vmem [shape: f32[8,128], index: 3, kind: output, shape index: {}]
  %s4 = sld [smem:[#allocation0]]
  $region22: #{linear_forward.1} parent=0
    _
  %s6 = ssub.s32 1, %s4
  %s7 = scalar_select 0, %s6, %s4
  %8 = sst [smem:[#allocation2]] %s2
  // Predicated region
  $region2: #{linear_forward.1} parent=0 // pred_check
    _
  $region3: #{linear_forward.1} parent=0 // pred_check_branch
    %10 = sbr.rel (0) target = $region5
  $region4: #{linear_forward.1} parent=0 // pred_region
    _
  $region5: #{linear_forward.1} parent=0 // pred_fallthru
    _
  // Predicated region
  $region6: #{linear_forward.1} parent=0 // pred_check
    _
  $region7: #{linear_forward.1} parent=0 // pred_check_branch
    %12 = sbr.rel (0) target = $region9
  $region8: #{linear_forward.1} parent=0 // pred_region
    _
  $region9: #{linear_forward.1} parent=0 // pred_fallthru
    _
  // Predicated region
  $region10: #{linear_forward.1} parent=0 // pred_check
    _
  $region11: #{linear_forward.1} parent=0 // pred_check_branch
    %14 = sbr.rel (0) target = $region13
  $region12: #{linear_forward.1} parent=0 // pred_region
    _
  $region13: #{linear_forward.1} parent=0 // pred_fallthru
    _
  %v15 = vld [vmem:[%s0] sm:$0xff]
  %v16 = vld [vmem:[%s0 + $0x8] sm:$0xff]
  %v17 = vld [vmem:[%s0 + $0x10] sm:$0xff]
  %v18 = vld [vmem:[%s0 + $0x18] sm:$0xff]
  %v19 = vld [vmem:[%s0 + $0x20] sm:$0xff]
  %v20 = vld [vmem:[%s0 + $0x28] sm:$0xff]
  %v21 = vld [vmem:[%s1] sm:$0xff]
  %v22 = vld [vmem:[%s1 + $0x8] sm:$0xff]
  %v23 = vld [vmem:[%s1 + $0x10] sm:$0xff]
  %v24 = vld [vmem:[%s1 + $0x18] sm:$0xff]
  %v25 = vld [vmem:[%s1 + $0x20] sm:$0xff]
  %v26 = vld [vmem:[%s1 + $0x28] sm:$0xff]
  %v27 = vld [vmem:[%s1 + $0x30] sm:$0xff]
  %v28 = vld [vmem:[%s1 + $0x38] sm:$0xff]
  %v29 = vld [vmem:[%s1 + $0x40] sm:$0xff]
  %v30 = vld [vmem:[%s1 + $0x48] sm:$0xff]
  %v31 = vld [vmem:[%s1 + $0x50] sm:$0xff]
  %v32 = vld [vmem:[%s1 + $0x58] sm:$0xff]
  %v33 = vld [vmem:[%s1 + $0x60] sm:$0xff]
  %v34 = vld [vmem:[%s1 + $0x68] sm:$0xff]
  %v35 = vld [vmem:[%s1 + $0x70] sm:$0xff]
  %v36 = vld [vmem:[%s1 + $0x78] sm:$0xff]
  %v37 = vld [vmem:[%s1 + $0x80] sm:$0xff]
  %v38 = vld [vmem:[%s1 + $0x88] sm:$0xff]
  %v39 = vld [vmem:[%s1 + $0x90] sm:$0xff]
  %v40 = vld [vmem:[%s1 + $0x98] sm:$0xff]
  %v41 = vld [vmem:[%s1 + $0xa0] sm:$0xff]
  %v42 = vld [vmem:[%s1 + $0xa8] sm:$0xff]
  %v43 = vld [vmem:[%s1 + $0xb0] sm:$0xff]
  %v44 = vld [vmem:[%s1 + $0xb8] sm:$0xff]
  %v45 = vld [vmem:[%s1 + $0xc0] sm:$0xff]
  %v46 = vld [vmem:[%s1 + $0xc8] sm:$0xff]
  %v47 = vld [vmem:[%s1 + $0xd0] sm:$0xff]
  %v48 = vld [vmem:[%s1 + $0xd8] sm:$0xff]
  %v49 = vld [vmem:[%s1 + $0xe0] sm:$0xff]
  %v50 = vld [vmem:[%s1 + $0xe8] sm:$0xff]
  %v51 = vld [vmem:[%s1 + $0xf0] sm:$0xff]
  %v52 = vld [vmem:[%s1 + $0xf8] sm:$0xff]
  %v53 = vld [vmem:[%s1 + $0x100] sm:$0xff]
  %v54 = vld [vmem:[%s1 + $0x108] sm:$0xff]
  %v55 = vld [vmem:[%s1 + $0x110] sm:$0xff]
  %v56 = vld [vmem:[%s1 + $0x118] sm:$0xff]
  %v57 = vld [vmem:[%s1 + $0x120] sm:$0xff]
  %v58 = vld [vmem:[%s1 + $0x128] sm:$0xff]
  %v59 = vld [vmem:[%s1 + $0x130] sm:$0xff]
  %v60 = vld [vmem:[%s1 + $0x138] sm:$0xff]
  %v61 = vld [vmem:[%s1 + $0x140] sm:$0xff]
  %v62 = vld [vmem:[%s1 + $0x148] sm:$0xff]
  %v63 = vld [vmem:[%s1 + $0x150] sm:$0xff]
  %v64 = vld [vmem:[%s1 + $0x158] sm:$0xff]
  %v65 = vld [vmem:[%s1 + $0x160] sm:$0xff]
  %v66 = vld [vmem:[%s1 + $0x168] sm:$0xff]
  %v67 = vld [vmem:[%s1 + $0x170] sm:$0xff]
  %v68 = vld [vmem:[%s1 + $0x178] sm:$0xff]
  %v69 = vld [vmem:[%s1 + $0x180] sm:$0xff]
  %v70 = vld [vmem:[%s1 + $0x188] sm:$0xff]
  %v71 = vld [vmem:[%s1 + $0x190] sm:$0xff]
  %v72 = vld [vmem:[%s1 + $0x198] sm:$0xff]
  %v73 = vld [vmem:[%s1 + $0x1a0] sm:$0xff]
  %v74 = vld [vmem:[%s1 + $0x1a8] sm:$0xff]
  %v75 = vld [vmem:[%s1 + $0x1b0] sm:$0xff]
  %v76 = vld [vmem:[%s1 + $0x1b8] sm:$0xff]
  %v77 = vld [vmem:[%s1 + $0x1c0] sm:$0xff]
  %v78 = vld [vmem:[%s1 + $0x1c8] sm:$0xff]
  %v79 = vld [vmem:[%s1 + $0x1d0] sm:$0xff]
  %v80 = vld [vmem:[%s1 + $0x1d8] sm:$0xff]
  %v81 = vld [vmem:[%s1 + $0x1e0] sm:$0xff]
  %v82 = vld [vmem:[%s1 + $0x1e8] sm:$0xff]
  %v83 = vld [vmem:[%s1 + $0x1f0] sm:$0xff]
  %v84 = vld [vmem:[%s1 + $0x1f8] sm:$0xff]
  %v85 = vld [vmem:[%s1 + $0x200] sm:$0xff]
  %v86 = vld [vmem:[%s1 + $0x208] sm:$0xff]
  %v87 = vld [vmem:[%s1 + $0x210] sm:$0xff]
  %v88 = vld [vmem:[%s1 + $0x218] sm:$0xff]
  %v89 = vld [vmem:[%s1 + $0x220] sm:$0xff]
  %v90 = vld [vmem:[%s1 + $0x228] sm:$0xff]
  %v91 = vld [vmem:[%s1 + $0x230] sm:$0xff]
  %v92 = vld [vmem:[%s1 + $0x238] sm:$0xff]
  %v93 = vld [vmem:[%s1 + $0x240] sm:$0xff]
  %v94 = vld [vmem:[%s1 + $0x248] sm:$0xff]
  %v95 = vld [vmem:[%s1 + $0x250] sm:$0xff]
  %v96 = vld [vmem:[%s1 + $0x258] sm:$0xff]
  %v97 = vld [vmem:[%s1 + $0x260] sm:$0xff]
  %v98 = vld [vmem:[%s1 + $0x268] sm:$0xff]
  %v99 = vld [vmem:[%s1 + $0x270] sm:$0xff]
  %v100 = vld [vmem:[%s1 + $0x278] sm:$0xff]
  %v101 = vld [vmem:[%s1 + $0x280] sm:$0xff]
  %v102 = vld [vmem:[%s1 + $0x288] sm:$0xff]
  %v103 = vld [vmem:[%s1 + $0x290] sm:$0xff]
  %v104 = vld [vmem:[%s1 + $0x298] sm:$0xff]
  %v105 = vld [vmem:[%s1 + $0x2a0] sm:$0xff]
  %v106 = vld [vmem:[%s1 + $0x2a8] sm:$0xff]
  %v107 = vld [vmem:[%s1 + $0x2b0] sm:$0xff]
  %v108 = vld [vmem:[%s1 + $0x2b8] sm:$0xff]
  %v109 = vld [vmem:[%s1 + $0x2c0] sm:$0xff]
  %v110 = vld [vmem:[%s1 + $0x2c8] sm:$0xff]
  %v111 = vld [vmem:[%s1 + $0x2d0] sm:$0xff]
  %v112 = vld [vmem:[%s1 + $0x2d8] sm:$0xff]
  %v113 = vld [vmem:[%s1 + $0x2e0] sm:$0xff]
  %v114 = vld [vmem:[%s1 + $0x2e8] sm:$0xff]
  %v115 = vld [vmem:[%s1 + $0x2f0] sm:$0xff]
  %v116 = vld [vmem:[%s1 + $0x2f8] sm:$0xff]
  %s117 = sld [smem:[#allocation2]]
  %v118 = vstv %s117
  %119 = vmatprep.subr.mxu0 0.0
  %v120 = vand.u32 %v36, 4294901760
  %121 = vmatpush1.msra.mxu0 %v120
  %122 = vmatprep.subr.mxu0 0.0
  %v123 = vand.u32 %v35, 4294901760
  %124 = vmatpush1.msra.mxu0 %v123
  %125 = vmatprep.subr.mxu0 0.0
  %v126 = vand.u32 %v34, 4294901760
  %127 = vmatpush1.msra.mxu0 %v126
  %128 = vmatprep.subr.mxu0 0.0
  %v129 = vand.u32 %v33, 4294901760
  %130 = vmatpush1.msra.mxu0 %v129
  %131 = vmatprep.subr.mxu0 0.0
  %v132 = vand.u32 %v32, 4294901760
  %133 = vmatpush1.msra.mxu0 %v132
  %134 = vmatprep.subr.mxu0 0.0
  %v135 = vand.u32 %v31, 4294901760
  %136 = vmatpush1.msra.mxu0 %v135
  %137 = vmatprep.subr.mxu0 0.0
  %v138 = vand.u32 %v30, 4294901760
  %139 = vmatpush1.msra.mxu0 %v138
  %140 = vmatprep.subr.mxu0 0.0
  %v141 = vand.u32 %v29, 4294901760
  %142 = vmatpush1.msra.mxu0 %v141
  %143 = vmatprep.subr.mxu0 0.0
  %v144 = vand.u32 %v28, 4294901760
  %145 = vmatpush1.msra.mxu0 %v144
  %146 = vmatprep.subr.mxu0 0.0
  %v147 = vand.u32 %v27, 4294901760
  %148 = vmatpush1.msra.mxu0 %v147
  %149 = vmatprep.subr.mxu0 0.0
  %v150 = vand.u32 %v26, 4294901760
  %151 = vmatpush1.msra.mxu0 %v150
  %152 = vmatprep.subr.mxu0 0.0
  %v153 = vand.u32 %v25, 4294901760
  %154 = vmatpush1.msra.mxu0 %v153
  %155 = vmatprep.subr.mxu0 0.0
  %v156 = vand.u32 %v24, 4294901760
  %157 = vmatpush1.msra.mxu0 %v156
  %158 = vmatprep.subr.mxu0 0.0
  %v159 = vand.u32 %v23, 4294901760
  %160 = vmatpush1.msra.mxu0 %v159
  %161 = vmatprep.subr.mxu0 0.0
  %v162 = vand.u32 %v22, 4294901760
  %163 = vmatpush1.msra.mxu0 %v162
  %164 = vmatprep.subr.mxu0 0.0
  %v165 = vand.u32 %v21, 4294901760
  %166 = vmatpush1.msra.mxu0 %v165
  %167 = vmatprep.subr.mxu0 0.0
  %v168 = vand.u32 %v52, 4294901760
  %169 = vmatpush2.msra.mxu0 %v168
  %170 = vmatprep.subr.mxu0 0.0
  %v171 = vand.u32 %v51, 4294901760
  %172 = vmatpush2.msra.mxu0 %v171
  %173 = vmatprep.subr.mxu0 0.0
  %v174 = vand.u32 %v50, 4294901760
  %175 = vmatpush2.msra.mxu0 %v174
  %176 = vmatprep.subr.mxu0 0.0
  %v177 = vand.u32 %v49, 4294901760
  %178 = vmatpush2.msra.mxu0 %v177
  %179 = vmatprep.subr.mxu0 0.0
  %v180 = vand.u32 %v48, 4294901760
  %181 = vmatpush2.msra.mxu0 %v180
  %182 = vmatprep.subr.mxu0 0.0
  %v183 = vand.u32 %v47, 4294901760
  %184 = vmatpush2.msra.mxu0 %v183
  %185 = vmatprep.subr.mxu0 0.0
  %v186 = vand.u32 %v46, 4294901760
  %187 = vmatpush2.msra.mxu0 %v186
  %188 = vmatprep.subr.mxu0 0.0
  %v189 = vand.u32 %v45, 4294901760
  %190 = vmatpush2.msra.mxu0 %v189
  %191 = vmatprep.subr.mxu0 0.0
  %v192 = vand.u32 %v44, 4294901760
  %193 = vmatpush2.msra.mxu0 %v192
  %194 = vmatprep.subr.mxu0 0.0
  %v195 = vand.u32 %v43, 4294901760
  %196 = vmatpush2.msra.mxu0 %v195
  %197 = vmatprep.subr.mxu0 0.0
  %v198 = vand.u32 %v42, 4294901760
  %199 = vmatpush2.msra.mxu0 %v198
  %200 = vmatprep.subr.mxu0 0.0
  %v201 = vand.u32 %v41, 4294901760
  %202 = vmatpush2.msra.mxu0 %v201
  %203 = vmatprep.subr.mxu0 0.0
  %v204 = vand.u32 %v40, 4294901760
  %205 = vmatpush2.msra.mxu0 %v204
  %206 = vmatprep.subr.mxu0 0.0
  %v207 = vand.u32 %v39, 4294901760
  %208 = vmatpush2.msra.mxu0 %v207
  %209 = vmatprep.subr.mxu0 0.0
  %v210 = vand.u32 %v38, 4294901760
  %211 = vmatpush2.msra.mxu0 %v210
  %212 = vmatprep.subr.mxu0 0.0
  %v213 = vand.u32 %v37, 4294901760
  %214 = vmatpush2.msra.mxu0 %v213
  %v215 = vand.u32 %v16, 4294901760
  %v216 = vsub.f32 %v16, %v215
  %v217 = vand.u32 %v216, 4294901760
  %v218 = vsub.f32 %v216, %v217
  %v219 = vand.u32 %v218, 4294901760
  %220 = vmatprep.mubr.f32.mxu0 %v219
  %v221 = vand.u32 %v15, 4294901760
  %v222 = vsub.f32 %v15, %v221
  %v223 = vand.u32 %v222, 4294901760
  %v224 = vsub.f32 %v222, %v223
  %v225 = vand.u32 %v224, 4294901760
  %226 = vmatmul.mubr.f32.gmra.mxu0 %v225
  %v227 = vpop.f32.mrf.mxu0
  %v228 = vadd.f32 %v118, %v227
  %v229 = vpop.f32.mrf.mxu0
  %230 = vdwg.mxu0
  %231 = vmatprep.subr.mxu0 0.0
  %v232 = vand.u32 %v36, 4294901760
  %v233 = vsub.f32 %v36, %v232
  %v234 = vand.u32 %v233, 4294901760
  %v235 = vsub.f32 %v233, %v234
  %v236 = vand.u32 %v235, 4294901760
  %237 = vmatpush1.msra.mxu0 %v236
  %238 = vmatprep.subr.mxu0 0.0
  %v239 = vand.u32 %v35, 4294901760
  %v240 = vsub.f32 %v35, %v239
  %v241 = vand.u32 %v240, 4294901760
  %v242 = vsub.f32 %v240, %v241
  %v243 = vand.u32 %v242, 4294901760
  %244 = vmatpush1.msra.mxu0 %v243
  %245 = vmatprep.subr.mxu0 0.0
  %v246 = vand.u32 %v34, 4294901760
  %v247 = vsub.f32 %v34, %v246
  %v248 = vand.u32 %v247, 4294901760
  %v249 = vsub.f32 %v247, %v248
  %v250 = vand.u32 %v249, 4294901760
  %251 = vmatpush1.msra.mxu0 %v250
  %252 = vmatprep.subr.mxu0 0.0
  %v253 = vand.u32 %v33, 4294901760
  %v254 = vsub.f32 %v33, %v253
  %v255 = vand.u32 %v254, 4294901760
  %v256 = vsub.f32 %v254, %v255
  %v257 = vand.u32 %v256, 4294901760
  %258 = vmatpush1.msra.mxu0 %v257
  %259 = vmatprep.subr.mxu0 0.0
  %v260 = vand.u32 %v32, 4294901760
  %v261 = vsub.f32 %v32, %v260
  %v262 = vand.u32 %v261, 4294901760
  %v263 = vsub.f32 %v261, %v262
  %v264 = vand.u32 %v263, 4294901760
  %265 = vmatpush1.msra.mxu0 %v264
  %266 = vmatprep.subr.mxu0 0.0
  %v267 = vand.u32 %v31, 4294901760
  %v268 = vsub.f32 %v31, %v267
  %v269 = vand.u32 %v268, 4294901760
  %v270 = vsub.f32 %v268, %v269
  %v271 = vand.u32 %v270, 4294901760
  %272 = vmatpush1.msra.mxu0 %v271
  %273 = vmatprep.subr.mxu0 0.0
  %v274 = vand.u32 %v30, 4294901760
  %v275 = vsub.f32 %v30, %v274
  %v276 = vand.u32 %v275, 4294901760
  %v277 = vsub.f32 %v275, %v276
  %v278 = vand.u32 %v277, 4294901760
  %279 = vmatpush1.msra.mxu0 %v278
  %280 = vmatprep.subr.mxu0 0.0
  %v281 = vand.u32 %v29, 4294901760
  %v282 = vsub.f32 %v29, %v281
  %v283 = vand.u32 %v282, 4294901760
  %v284 = vsub.f32 %v282, %v283
  %v285 = vand.u32 %v284, 4294901760
  %286 = vmatpush1.msra.mxu0 %v285
  %287 = vmatprep.subr.mxu0 0.0
  %v288 = vand.u32 %v28, 4294901760
  %v289 = vsub.f32 %v28, %v288
  %v290 = vand.u32 %v289, 4294901760
  %v291 = vsub.f32 %v289, %v290
  %v292 = vand.u32 %v291, 4294901760
  %293 = vmatpush1.msra.mxu0 %v292
  %294 = vmatprep.subr.mxu0 0.0
  %v295 = vand.u32 %v27, 4294901760
  %v296 = vsub.f32 %v27, %v295
  %v297 = vand.u32 %v296, 4294901760
  %v298 = vsub.f32 %v296, %v297
  %v299 = vand.u32 %v298, 4294901760
  %300 = vmatpush1.msra.mxu0 %v299
  %301 = vmatprep.subr.mxu0 0.0
  %v302 = vand.u32 %v26, 4294901760
  %v303 = vsub.f32 %v26, %v302
  %v304 = vand.u32 %v303, 4294901760
  %v305 = vsub.f32 %v303, %v304
  %v306 = vand.u32 %v305, 4294901760
  %307 = vmatpush1.msra.mxu0 %v306
  %308 = vmatprep.subr.mxu0 0.0
  %v309 = vand.u32 %v25, 4294901760
  %v310 = vsub.f32 %v25, %v309
  %v311 = vand.u32 %v310, 4294901760
  %v312 = vsub.f32 %v310, %v311
  %v313 = vand.u32 %v312, 4294901760
  %314 = vmatpush1.msra.mxu0 %v313
  %315 = vmatprep.subr.mxu0 0.0
  %v316 = vand.u32 %v24, 4294901760
  %v317 = vsub.f32 %v24, %v316
  %v318 = vand.u32 %v317, 4294901760
  %v319 = vsub.f32 %v317, %v318
  %v320 = vand.u32 %v319, 4294901760
  %321 = vmatpush1.msra.mxu0 %v320
  %322 = vmatprep.subr.mxu0 0.0
  %v323 = vand.u32 %v23, 4294901760
  %v324 = vsub.f32 %v23, %v323
  %v325 = vand.u32 %v324, 4294901760
  %v326 = vsub.f32 %v324, %v325
  %v327 = vand.u32 %v326, 4294901760
  %328 = vmatpush1.msra.mxu0 %v327
  %329 = vmatprep.subr.mxu0 0.0
  %v330 = vand.u32 %v22, 4294901760
  %v331 = vsub.f32 %v22, %v330
  %v332 = vand.u32 %v331, 4294901760
  %v333 = vsub.f32 %v331, %v332
  %v334 = vand.u32 %v333, 4294901760
  %335 = vmatpush1.msra.mxu0 %v334
  %336 = vmatprep.subr.mxu0 0.0
  %v337 = vand.u32 %v21, 4294901760
  %v338 = vsub.f32 %v21, %v337
  %v339 = vand.u32 %v338, 4294901760
  %v340 = vsub.f32 %v338, %v339
  %v341 = vand.u32 %v340, 4294901760
  %342 = vmatpush1.msra.mxu0 %v341
  %343 = vmatprep.subr.mxu0 0.0
  %v344 = vand.u32 %v52, 4294901760
  %v345 = vsub.f32 %v52, %v344
  %v346 = vand.u32 %v345, 4294901760
  %v347 = vsub.f32 %v345, %v346
  %v348 = vand.u32 %v347, 4294901760
  %349 = vmatpush2.msra.mxu0 %v348
  %350 = vmatprep.subr.mxu0 0.0
  %v351 = vand.u32 %v51, 4294901760
  %v352 = vsub.f32 %v51, %v351
  %v353 = vand.u32 %v352, 4294901760
  %v354 = vsub.f32 %v352, %v353
  %v355 = vand.u32 %v354, 4294901760
  %356 = vmatpush2.msra.mxu0 %v355
  %357 = vmatprep.subr.mxu0 0.0
  %v358 = vand.u32 %v50, 4294901760
  %v359 = vsub.f32 %v50, %v358
  %v360 = vand.u32 %v359, 4294901760
  %v361 = vsub.f32 %v359, %v360
  %v362 = vand.u32 %v361, 4294901760
  %363 = vmatpush2.msra.mxu0 %v362
  %364 = vmatprep.subr.mxu0 0.0
  %v365 = vand.u32 %v49, 4294901760
  %v366 = vsub.f32 %v49, %v365
  %v367 = vand.u32 %v366, 4294901760
  %v368 = vsub.f32 %v366, %v367
  %v369 = vand.u32 %v368, 4294901760
  %370 = vmatpush2.msra.mxu0 %v369
  %371 = vmatprep.subr.mxu0 0.0
  %v372 = vand.u32 %v48, 4294901760
  %v373 = vsub.f32 %v48, %v372
  %v374 = vand.u32 %v373, 4294901760
  %v375 = vsub.f32 %v373, %v374
  %v376 = vand.u32 %v375, 4294901760
  %377 = vmatpush2.msra.mxu0 %v376
  %378 = vmatprep.subr.mxu0 0.0
  %v379 = vand.u32 %v47, 4294901760
  %v380 = vsub.f32 %v47, %v379
  %v381 = vand.u32 %v380, 4294901760
  %v382 = vsub.f32 %v380, %v381
  %v383 = vand.u32 %v382, 4294901760
  %384 = vmatpush2.msra.mxu0 %v383
  %385 = vmatprep.subr.mxu0 0.0
  %v386 = vand.u32 %v46, 4294901760
  %v387 = vsub.f32 %v46, %v386
  %v388 = vand.u32 %v387, 4294901760
  %v389 = vsub.f32 %v387, %v388
  %v390 = vand.u32 %v389, 4294901760
  %391 = vmatpush2.msra.mxu0 %v390
  %392 = vmatprep.subr.mxu0 0.0
  %v393 = vand.u32 %v45, 4294901760
  %v394 = vsub.f32 %v45, %v393
  %v395 = vand.u32 %v394, 4294901760
  %v396 = vsub.f32 %v394, %v395
  %v397 = vand.u32 %v396, 4294901760
  %398 = vmatpush2.msra.mxu0 %v397
  %399 = vmatprep.subr.mxu0 0.0
  %v400 = vand.u32 %v44, 4294901760
  %v401 = vsub.f32 %v44, %v400
  %v402 = vand.u32 %v401, 4294901760
  %v403 = vsub.f32 %v401, %v402
  %v404 = vand.u32 %v403, 4294901760
  %405 = vmatpush2.msra.mxu0 %v404
  %406 = vmatprep.subr.mxu0 0.0
  %v407 = vand.u32 %v43, 4294901760
  %v408 = vsub.f32 %v43, %v407
  %v409 = vand.u32 %v408, 4294901760
  %v410 = vsub.f32 %v408, %v409
  %v411 = vand.u32 %v410, 4294901760
  %412 = vmatpush2.msra.mxu0 %v411
  %413 = vmatprep.subr.mxu0 0.0
  %v414 = vand.u32 %v42, 4294901760
  %v415 = vsub.f32 %v42, %v414
  %v416 = vand.u32 %v415, 4294901760
  %v417 = vsub.f32 %v415, %v416
  %v418 = vand.u32 %v417, 4294901760
  %419 = vmatpush2.msra.mxu0 %v418
  %420 = vmatprep.subr.mxu0 0.0
  %v421 = vand.u32 %v41, 4294901760
  %v422 = vsub.f32 %v41, %v421
  %v423 = vand.u32 %v422, 4294901760
  %v424 = vsub.f32 %v422, %v423
  %v425 = vand.u32 %v424, 4294901760
  %426 = vmatpush2.msra.mxu0 %v425
  %427 = vmatprep.subr.mxu0 0.0
  %v428 = vand.u32 %v40, 4294901760
  %v429 = vsub.f32 %v40, %v428
  %v430 = vand.u32 %v429, 4294901760
  %v431 = vsub.f32 %v429, %v430
  %v432 = vand.u32 %v431, 4294901760
  %433 = vmatpush2.msra.mxu0 %v432
  %434 = vmatprep.subr.mxu0 0.0
  %v435 = vand.u32 %v39, 4294901760
  %v436 = vsub.f32 %v39, %v435
  %v437 = vand.u32 %v436, 4294901760
  %v438 = vsub.f32 %v436, %v437
  %v439 = vand.u32 %v438, 4294901760
  %440 = vmatpush2.msra.mxu0 %v439
  %441 = vmatprep.subr.mxu0 0.0
  %v442 = vand.u32 %v38, 4294901760
  %v443 = vsub.f32 %v38, %v442
  %v444 = vand.u32 %v443, 4294901760
  %v445 = vsub.f32 %v443, %v444
  %v446 = vand.u32 %v445, 4294901760
  %447 = vmatpush2.msra.mxu0 %v446
  %448 = vmatprep.subr.mxu0 0.0
  %v449 = vand.u32 %v37, 4294901760
  %v450 = vsub.f32 %v37, %v449
  %v451 = vand.u32 %v450, 4294901760
  %v452 = vsub.f32 %v450, %v451
  %v453 = vand.u32 %v452, 4294901760
  %454 = vmatpush2.msra.mxu0 %v453
  %v455 = vand.u32 %v16, 4294901760
  %456 = vmatprep.mubr.f32.mxu0 %v455
  %v457 = vand.u32 %v15, 4294901760
  %458 = vmatmul.mubr.f32.gmra.mxu0 %v457
  %v459 = vpop.f32.mrf.mxu0
  %v460 = vadd.f32 %v228, %v459
  %v461 = vpop.f32.mrf.mxu0
  %462 = vdwg.mxu0
  %463 = vmatprep.subr.mxu0 0.0
  %v464 = vand.u32 %v36, 4294901760
  %v465 = vsub.f32 %v36, %v464
  %466 = vmatpush1.msra.mxu0 %v465
  %467 = vmatprep.subr.mxu0 0.0
  %v468 = vand.u32 %v35, 4294901760
  %v469 = vsub.f32 %v35, %v468
  %470 = vmatpush1.msra.mxu0 %v469
  %471 = vmatprep.subr.mxu0 0.0
  %v472 = vand.u32 %v34, 4294901760
  %v473 = vsub.f32 %v34, %v472
  %474 = vmatpush1.msra.mxu0 %v473
  %475 = vmatprep.subr.mxu0 0.0
  %v476 = vand.u32 %v33, 4294901760
  %v477 = vsub.f32 %v33, %v476
  %478 = vmatpush1.msra.mxu0 %v477
  %479 = vmatprep.subr.mxu0 0.0
  %v480 = vand.u32 %v32, 4294901760
  %v481 = vsub.f32 %v32, %v480
  %482 = vmatpush1.msra.mxu0 %v481
  %483 = vmatprep.subr.mxu0 0.0
  %v484 = vand.u32 %v31, 4294901760
  %v485 = vsub.f32 %v31, %v484
  %486 = vmatpush1.msra.mxu0 %v485
  %487 = vmatprep.subr.mxu0 0.0
  %v488 = vand.u32 %v30, 4294901760
  %v489 = vsub.f32 %v30, %v488
  %490 = vmatpush1.msra.mxu0 %v489
  %491 = vmatprep.subr.mxu0 0.0
  %v492 = vand.u32 %v29, 4294901760
  %v493 = vsub.f32 %v29, %v492
  %494 = vmatpush1.msra.mxu0 %v493
  %495 = vmatprep.subr.mxu0 0.0
  %v496 = vand.u32 %v28, 4294901760
  %v497 = vsub.f32 %v28, %v496
  %498 = vmatpush1.msra.mxu0 %v497
  %499 = vmatprep.subr.mxu0 0.0
  %v500 = vand.u32 %v27, 4294901760
  %v501 = vsub.f32 %v27, %v500
  %502 = vmatpush1.msra.mxu0 %v501
  %503 = vmatprep.subr.mxu0 0.0
  %v504 = vand.u32 %v26, 4294901760
  %v505 = vsub.f32 %v26, %v504
  %506 = vmatpush1.msra.mxu0 %v505
  %507 = vmatprep.subr.mxu0 0.0
  %v508 = vand.u32 %v25, 4294901760
  %v509 = vsub.f32 %v25, %v508
  %510 = vmatpush1.msra.mxu0 %v509
  %511 = vmatprep.subr.mxu0 0.0
  %v512 = vand.u32 %v24, 4294901760
  %v513 = vsub.f32 %v24, %v512
  %514 = vmatpush1.msra.mxu0 %v513
  %515 = vmatprep.subr.mxu0 0.0
  %v516 = vand.u32 %v23, 4294901760
  %v517 = vsub.f32 %v23, %v516
  %518 = vmatpush1.msra.mxu0 %v517
  %519 = vmatprep.subr.mxu0 0.0
  %v520 = vand.u32 %v22, 4294901760
  %v521 = vsub.f32 %v22, %v520
  %522 = vmatpush1.msra.mxu0 %v521
  %523 = vmatprep.subr.mxu0 0.0
  %v524 = vand.u32 %v21, 4294901760
  %v525 = vsub.f32 %v21, %v524
  %526 = vmatpush1.msra.mxu0 %v525
  %527 = vmatprep.subr.mxu0 0.0
  %v528 = vand.u32 %v52, 4294901760
  %v529 = vsub.f32 %v52, %v528
  %530 = vmatpush2.msra.mxu0 %v529
  %531 = vmatprep.subr.mxu0 0.0
  %v532 = vand.u32 %v51, 4294901760
  %v533 = vsub.f32 %v51, %v532
  %534 = vmatpush2.msra.mxu0 %v533
  %535 = vmatprep.subr.mxu0 0.0
  %v536 = vand.u32 %v50, 4294901760
  %v537 = vsub.f32 %v50, %v536
  %538 = vmatpush2.msra.mxu0 %v537
  %539 = vmatprep.subr.mxu0 0.0
  %v540 = vand.u32 %v49, 4294901760
  %v541 = vsub.f32 %v49, %v540
  %542 = vmatpush2.msra.mxu0 %v541
  %543 = vmatprep.subr.mxu0 0.0
  %v544 = vand.u32 %v48, 4294901760
  %v545 = vsub.f32 %v48, %v544
  %546 = vmatpush2.msra.mxu0 %v545
  %547 = vmatprep.subr.mxu0 0.0
  %v548 = vand.u32 %v47, 4294901760
  %v549 = vsub.f32 %v47, %v548
  %550 = vmatpush2.msra.mxu0 %v549
  %551 = vmatprep.subr.mxu0 0.0
  %v552 = vand.u32 %v46, 4294901760
  %v553 = vsub.f32 %v46, %v552
  %554 = vmatpush2.msra.mxu0 %v553
  %555 = vmatprep.subr.mxu0 0.0
  %v556 = vand.u32 %v45, 4294901760
  %v557 = vsub.f32 %v45, %v556
  %558 = vmatpush2.msra.mxu0 %v557
  %559 = vmatprep.subr.mxu0 0.0
  %v560 = vand.u32 %v44, 4294901760
  %v561 = vsub.f32 %v44, %v560
  %562 = vmatpush2.msra.mxu0 %v561
  %563 = vmatprep.subr.mxu0 0.0
  %v564 = vand.u32 %v43, 4294901760
  %v565 = vsub.f32 %v43, %v564
  %566 = vmatpush2.msra.mxu0 %v565
  %567 = vmatprep.subr.mxu0 0.0
  %v568 = vand.u32 %v42, 4294901760
  %v569 = vsub.f32 %v42, %v568
  %570 = vmatpush2.msra.mxu0 %v569
  %571 = vmatprep.subr.mxu0 0.0
  %v572 = vand.u32 %v41, 4294901760
  %v573 = vsub.f32 %v41, %v572
  %574 = vmatpush2.msra.mxu0 %v573
  %575 = vmatprep.subr.mxu0 0.0
  %v576 = vand.u32 %v40, 4294901760
  %v577 = vsub.f32 %v40, %v576
  %578 = vmatpush2.msra.mxu0 %v577
  %579 = vmatprep.subr.mxu0 0.0
  %v580 = vand.u32 %v39, 4294901760
  %v581 = vsub.f32 %v39, %v580
  %582 = vmatpush2.msra.mxu0 %v581
  %583 = vmatprep.subr.mxu0 0.0
  %v584 = vand.u32 %v38, 4294901760
  %v585 = vsub.f32 %v38, %v584
  %586 = vmatpush2.msra.mxu0 %v585
  %587 = vmatprep.subr.mxu0 0.0
  %v588 = vand.u32 %v37, 4294901760
  %v589 = vsub.f32 %v37, %v588
  %590 = vmatpush2.msra.mxu0 %v589
  %v591 = vand.u32 %v16, 4294901760
  %v592 = vsub.f32 %v16, %v591
  %593 = vmatprep.mubr.f32.mxu0 %v592
  %v594 = vand.u32 %v15, 4294901760
  %v595 = vsub.f32 %v15, %v594
  %596 = vmatmul.mubr.f32.gmra.mxu0 %v595
  %v597 = vpop.f32.mrf.mxu0
  %v598 = vadd.f32 %v460, %v597
  %v599 = vpop.f32.mrf.mxu0
  %600 = vdwg.mxu0
  %601 = vmatprep.subr.mxu0 0.0
  %v602 = vand.u32 %v36, 4294901760
  %603 = vmatpush1.msra.mxu0 %v602
  %604 = vmatprep.subr.mxu0 0.0
  %v605 = vand.u32 %v35, 4294901760
  %606 = vmatpush1.msra.mxu0 %v605
  %607 = vmatprep.subr.mxu0 0.0
  %v608 = vand.u32 %v34, 4294901760
  %609 = vmatpush1.msra.mxu0 %v608
  %610 = vmatprep.subr.mxu0 0.0
  %v611 = vand.u32 %v33, 4294901760
  %612 = vmatpush1.msra.mxu0 %v611
  %613 = vmatprep.subr.mxu0 0.0
  %v614 = vand.u32 %v32, 4294901760
  %615 = vmatpush1.msra.mxu0 %v614
  %616 = vmatprep.subr.mxu0 0.0
  %v617 = vand.u32 %v31, 4294901760
  %618 = vmatpush1.msra.mxu0 %v617
  %619 = vmatprep.subr.mxu0 0.0
  %v620 = vand.u32 %v30, 4294901760
  %621 = vmatpush1.msra.mxu0 %v620
  %622 = vmatprep.subr.mxu0 0.0
  %v623 = vand.u32 %v29, 4294901760
  %624 = vmatpush1.msra.mxu0 %v623
  %625 = vmatprep.subr.mxu0 0.0
  %v626 = vand.u32 %v28, 4294901760
  %627 = vmatpush1.msra.mxu0 %v626
  %628 = vmatprep.subr.mxu0 0.0
  %v629 = vand.u32 %v27, 4294901760
  %630 = vmatpush1.msra.mxu0 %v629
  %631 = vmatprep.subr.mxu0 0.0
  %v632 = vand.u32 %v26, 4294901760
  %633 = vmatpush1.msra.mxu0 %v632
  %634 = vmatprep.subr.mxu0 0.0
  %v635 = vand.u32 %v25, 4294901760
  %636 = vmatpush1.msra.mxu0 %v635
  %637 = vmatprep.subr.mxu0 0.0
  %v638 = vand.u32 %v24, 4294901760
  %639 = vmatpush1.msra.mxu0 %v638
  %640 = vmatprep.subr.mxu0 0.0
  %v641 = vand.u32 %v23, 4294901760
  %642 = vmatpush1.msra.mxu0 %v641
  %643 = vmatprep.subr.mxu0 0.0
  %v644 = vand.u32 %v22, 4294901760
  %645 = vmatpush1.msra.mxu0 %v644
  %646 = vmatprep.subr.mxu0 0.0
  %v647 = vand.u32 %v21, 4294901760
  %648 = vmatpush1.msra.mxu0 %v647
  %649 = vmatprep.subr.mxu0 0.0
  %v650 = vand.u32 %v52, 4294901760
  %651 = vmatpush2.msra.mxu0 %v650
  %652 = vmatprep.subr.mxu0 0.0
  %v653 = vand.u32 %v51, 4294901760
  %654 = vmatpush2.msra.mxu0 %v653
  %655 = vmatprep.subr.mxu0 0.0
  %v656 = vand.u32 %v50, 4294901760
  %657 = vmatpush2.msra.mxu0 %v656
  %658 = vmatprep.subr.mxu0 0.0
  %v659 = vand.u32 %v49, 4294901760
  %660 = vmatpush2.msra.mxu0 %v659
  %661 = vmatprep.subr.mxu0 0.0
  %v662 = vand.u32 %v48, 4294901760
  %663 = vmatpush2.msra.mxu0 %v662
  %664 = vmatprep.subr.mxu0 0.0
  %v665 = vand.u32 %v47, 4294901760
  %666 = vmatpush2.msra.mxu0 %v665
  %667 = vmatprep.subr.mxu0 0.0
  %v668 = vand.u32 %v46, 4294901760
  %669 = vmatpush2.msra.mxu0 %v668
  %670 = vmatprep.subr.mxu0 0.0
  %v671 = vand.u32 %v45, 4294901760
  %672 = vmatpush2.msra.mxu0 %v671
  %673 = vmatprep.subr.mxu0 0.0
  %v674 = vand.u32 %v44, 4294901760
  %675 = vmatpush2.msra.mxu0 %v674
  %676 = vmatprep.subr.mxu0 0.0
  %v677 = vand.u32 %v43, 4294901760
  %678 = vmatpush2.msra.mxu0 %v677
  %679 = vmatprep.subr.mxu0 0.0
  %v680 = vand.u32 %v42, 4294901760
  %681 = vmatpush2.msra.mxu0 %v680
  %682 = vmatprep.subr.mxu0 0.0
  %v683 = vand.u32 %v41, 4294901760
  %684 = vmatpush2.msra.mxu0 %v683
  %685 = vmatprep.subr.mxu0 0.0
  %v686 = vand.u32 %v40, 4294901760
  %687 = vmatpush2.msra.mxu0 %v686
  %688 = vmatprep.subr.mxu0 0.0
  %v689 = vand.u32 %v39, 4294901760
  %690 = vmatpush2.msra.mxu0 %v689
  %691 = vmatprep.subr.mxu0 0.0
  %v692 = vand.u32 %v38, 4294901760
  %693 = vmatpush2.msra.mxu0 %v692
  %694 = vmatprep.subr.mxu0 0.0
  %v695 = vand.u32 %v37, 4294901760
  %696 = vmatpush2.msra.mxu0 %v695
  %v697 = vand.u32 %v16, 4294901760
  %v698 = vsub.f32 %v16, %v697
  %v699 = vand.u32 %v698, 4294901760
  %700 = vmatprep.mubr.f32.mxu0 %v699
  %v701 = vand.u32 %v15, 4294901760
  %v702 = vsub.f32 %v15, %v701
  %v703 = vand.u32 %v702, 4294901760
  %704 = vmatmul.mubr.f32.gmra.mxu0 %v703
  %v705 = vpop.f32.mrf.mxu0
  %v706 = vadd.f32 %v598, %v705
  %v707 = vpop.f32.mrf.mxu0
  %708 = vdwg.mxu0
  %709 = vmatprep.subr.mxu0 0.0
  %v710 = vand.u32 %v36, 4294901760
  %v711 = vsub.f32 %v36, %v710
  %v712 = vand.u32 %v711, 4294901760
  %713 = vmatpush1.msra.mxu0 %v712
  %714 = vmatprep.subr.mxu0 0.0
  %v715 = vand.u32 %v35, 4294901760
  %v716 = vsub.f32 %v35, %v715
  %v717 = vand.u32 %v716, 4294901760
  %718 = vmatpush1.msra.mxu0 %v717
  %719 = vmatprep.subr.mxu0 0.0
  %v720 = vand.u32 %v34, 4294901760
  %v721 = vsub.f32 %v34, %v720
  %v722 = vand.u32 %v721, 4294901760
  %723 = vmatpush1.msra.mxu0 %v722
  %724 = vmatprep.subr.mxu0 0.0
  %v725 = vand.u32 %v33, 4294901760
  %v726 = vsub.f32 %v33, %v725
  %v727 = vand.u32 %v726, 4294901760
  %728 = vmatpush1.msra.mxu0 %v727
  %729 = vmatprep.subr.mxu0 0.0
  %v730 = vand.u32 %v32, 4294901760
  %v731 = vsub.f32 %v32, %v730
  %v732 = vand.u32 %v731, 4294901760
  %733 = vmatpush1.msra.mxu0 %v732
  %734 = vmatprep.subr.mxu0 0.0
  %v735 = vand.u32 %v31, 4294901760
  %v736 = vsub.f32 %v31, %v735
  %v737 = vand.u32 %v736, 4294901760
  %738 = vmatpush1.msra.mxu0 %v737
  %739 = vmatprep.subr.mxu0 0.0
  %v740 = vand.u32 %v30, 4294901760
  %v741 = vsub.f32 %v30, %v740
  %v742 = vand.u32 %v741, 4294901760
  %743 = vmatpush1.msra.mxu0 %v742
  %744 = vmatprep.subr.mxu0 0.0
  %v745 = vand.u32 %v29, 4294901760
  %v746 = vsub.f32 %v29, %v745
  %v747 = vand.u32 %v746, 4294901760
  %748 = vmatpush1.msra.mxu0 %v747
  %749 = vmatprep.subr.mxu0 0.0
  %v750 = vand.u32 %v28, 4294901760
  %v751 = vsub.f32 %v28, %v750
  %v752 = vand.u32 %v751, 4294901760
  %753 = vmatpush1.msra.mxu0 %v752
  %754 = vmatprep.subr.mxu0 0.0
  %v755 = vand.u32 %v27, 4294901760
  %v756 = vsub.f32 %v27, %v755
  %v757 = vand.u32 %v756, 4294901760
  %758 = vmatpush1.msra.mxu0 %v757
  %759 = vmatprep.subr.mxu0 0.0
  %v760 = vand.u32 %v26, 4294901760
  %v761 = vsub.f32 %v26, %v760
  %v762 = vand.u32 %v761, 4294901760
  %763 = vmatpush1.msra.mxu0 %v762
  %764 = vmatprep.subr.mxu0 0.0
  %v765 = vand.u32 %v25, 4294901760
  %v766 = vsub.f32 %v25, %v765
  %v767 = vand.u32 %v766, 4294901760
  %768 = vmatpush1.msra.mxu0 %v767
  %769 = vmatprep.subr.mxu0 0.0
  %v770 = vand.u32 %v24, 4294901760
  %v771 = vsub.f32 %v24, %v770
  %v772 = vand.u32 %v771, 4294901760
  %773 = vmatpush1.msra.mxu0 %v772
  %774 = vmatprep.subr.mxu0 0.0
  %v775 = vand.u32 %v23, 4294901760
  %v776 = vsub.f32 %v23, %v775
  %v777 = vand.u32 %v776, 4294901760
  %778 = vmatpush1.msra.mxu0 %v777
  %779 = vmatprep.subr.mxu0 0.0
  %v780 = vand.u32 %v22, 4294901760
  %v781 = vsub.f32 %v22, %v780
  %v782 = vand.u32 %v781, 4294901760
  %783 = vmatpush1.msra.mxu0 %v782
  %784 = vmatprep.subr.mxu0 0.0
  %v785 = vand.u32 %v21, 4294901760
  %v786 = vsub.f32 %v21, %v785
  %v787 = vand.u32 %v786, 4294901760
  %788 = vmatpush1.msra.mxu0 %v787
  %789 = vmatprep.subr.mxu0 0.0
  %v790 = vand.u32 %v52, 4294901760
  %v791 = vsub.f32 %v52, %v790
  %v792 = vand.u32 %v791, 4294901760
  %793 = vmatpush2.msra.mxu0 %v792
  %794 = vmatprep.subr.mxu0 0.0
  %v795 = vand.u32 %v51, 4294901760
  %v796 = vsub.f32 %v51, %v795
  %v797 = vand.u32 %v796, 4294901760
  %798 = vmatpush2.msra.mxu0 %v797
  %799 = vmatprep.subr.mxu0 0.0
  %v800 = vand.u32 %v50, 4294901760
  %v801 = vsub.f32 %v50, %v800
  %v802 = vand.u32 %v801, 4294901760
  %803 = vmatpush2.msra.mxu0 %v802
  %804 = vmatprep.subr.mxu0 0.0
  %v805 = vand.u32 %v49, 4294901760
  %v806 = vsub.f32 %v49, %v805
  %v807 = vand.u32 %v806, 4294901760
  %808 = vmatpush2.msra.mxu0 %v807
  %809 = vmatprep.subr.mxu0 0.0
  %v810 = vand.u32 %v48, 4294901760
  %v811 = vsub.f32 %v48, %v810
  %v812 = vand.u32 %v811, 4294901760
  %813 = vmatpush2.msra.mxu0 %v812
  %814 = vmatprep.subr.mxu0 0.0
  %v815 = vand.u32 %v47, 4294901760
  %v816 = vsub.f32 %v47, %v815
  %v817 = vand.u32 %v816, 4294901760
  %818 = vmatpush2.msra.mxu0 %v817
  %819 = vmatprep.subr.mxu0 0.0
  %v820 = vand.u32 %v46, 4294901760
  %v821 = vsub.f32 %v46, %v820
  %v822 = vand.u32 %v821, 4294901760
  %823 = vmatpush2.msra.mxu0 %v822
  %824 = vmatprep.subr.mxu0 0.0
  %v825 = vand.u32 %v45, 4294901760
  %v826 = vsub.f32 %v45, %v825
  %v827 = vand.u32 %v826, 4294901760
  %828 = vmatpush2.msra.mxu0 %v827
  %829 = vmatprep.subr.mxu0 0.0
  %v830 = vand.u32 %v44, 4294901760
  %v831 = vsub.f32 %v44, %v830
  %v832 = vand.u32 %v831, 4294901760
  %833 = vmatpush2.msra.mxu0 %v832
  %834 = vmatprep.subr.mxu0 0.0
  %v835 = vand.u32 %v43, 4294901760
  %v836 = vsub.f32 %v43, %v835
  %v837 = vand.u32 %v836, 4294901760
  %838 = vmatpush2.msra.mxu0 %v837
  %839 = vmatprep.subr.mxu0 0.0
  %v840 = vand.u32 %v42, 4294901760
  %v841 = vsub.f32 %v42, %v840
  %v842 = vand.u32 %v841, 4294901760
  %843 = vmatpush2.msra.mxu0 %v842
  %844 = vmatprep.subr.mxu0 0.0
  %v845 = vand.u32 %v41, 4294901760
  %v846 = vsub.f32 %v41, %v845
  %v847 = vand.u32 %v846, 4294901760
  %848 = vmatpush2.msra.mxu0 %v847
  %849 = vmatprep.subr.mxu0 0.0
  %v850 = vand.u32 %v40, 4294901760
  %v851 = vsub.f32 %v40, %v850
  %v852 = vand.u32 %v851, 4294901760
  %853 = vmatpush2.msra.mxu0 %v852
  %854 = vmatprep.subr.mxu0 0.0
  %v855 = vand.u32 %v39, 4294901760
  %v856 = vsub.f32 %v39, %v855
  %v857 = vand.u32 %v856, 4294901760
  %858 = vmatpush2.msra.mxu0 %v857
  %859 = vmatprep.subr.mxu0 0.0
  %v860 = vand.u32 %v38, 4294901760
  %v861 = vsub.f32 %v38, %v860
  %v862 = vand.u32 %v861, 4294901760
  %863 = vmatpush2.msra.mxu0 %v862
  %864 = vmatprep.subr.mxu0 0.0
  %v865 = vand.u32 %v37, 4294901760
  %v866 = vsub.f32 %v37, %v865
  %v867 = vand.u32 %v866, 4294901760
  %868 = vmatpush2.msra.mxu0 %v867
  %v869 = vand.u32 %v16, 4294901760
  %870 = vmatprep.mubr.f32.mxu0 %v869
  %v871 = vand.u32 %v15, 4294901760
  %872 = vmatmul.mubr.f32.gmra.mxu0 %v871
  %v873 = vpop.f32.mrf.mxu0
  %v874 = vadd.f32 %v706, %v873
  %v875 = vpop.f32.mrf.mxu0
  %876 = vdwg.mxu0
  %877 = vmatprep.subr.mxu0 0.0
  %v878 = vand.u32 %v36, 4294901760
  %879 = vmatpush1.msra.mxu0 %v878
  %880 = vmatprep.subr.mxu0 0.0
  %v881 = vand.u32 %v35, 4294901760
  %882 = vmatpush1.msra.mxu0 %v881
  %883 = vmatprep.subr.mxu0 0.0
  %v884 = vand.u32 %v34, 4294901760
  %885 = vmatpush1.msra.mxu0 %v884
  %886 = vmatprep.subr.mxu0 0.0
  %v887 = vand.u32 %v33, 4294901760
  %888 = vmatpush1.msra.mxu0 %v887
  %889 = vmatprep.subr.mxu0 0.0
  %v890 = vand.u32 %v32, 4294901760
  %891 = vmatpush1.msra.mxu0 %v890
  %892 = vmatprep.subr.mxu0 0.0
  %v893 = vand.u32 %v31, 4294901760
  %894 = vmatpush1.msra.mxu0 %v893
  %895 = vmatprep.subr.mxu0 0.0
  %v896 = vand.u32 %v30, 4294901760
  %897 = vmatpush1.msra.mxu0 %v896
  %898 = vmatprep.subr.mxu0 0.0
  %v899 = vand.u32 %v29, 4294901760
  %900 = vmatpush1.msra.mxu0 %v899
  %901 = vmatprep.subr.mxu0 0.0
  %v902 = vand.u32 %v28, 4294901760
  %903 = vmatpush1.msra.mxu0 %v902
  %904 = vmatprep.subr.mxu0 0.0
  %v905 = vand.u32 %v27, 4294901760
  %906 = vmatpush1.msra.mxu0 %v905
  %907 = vmatprep.subr.mxu0 0.0
  %v908 = vand.u32 %v26, 4294901760
  %909 = vmatpush1.msra.mxu0 %v908
  %910 = vmatprep.subr.mxu0 0.0
  %v911 = vand.u32 %v25, 4294901760
  %912 = vmatpush1.msra.mxu0 %v911
  %913 = vmatprep.subr.mxu0 0.0
  %v914 = vand.u32 %v24, 4294901760
  %915 = vmatpush1.msra.mxu0 %v914
  %916 = vmatprep.subr.mxu0 0.0
  %v917 = vand.u32 %v23, 4294901760
  %918 = vmatpush1.msra.mxu0 %v917
  %919 = vmatprep.subr.mxu0 0.0
  %v920 = vand.u32 %v22, 4294901760
  %921 = vmatpush1.msra.mxu0 %v920
  %922 = vmatprep.subr.mxu0 0.0
  %v923 = vand.u32 %v21, 4294901760
  %924 = vmatpush1.msra.mxu0 %v923
  %925 = vmatprep.subr.mxu0 0.0
  %v926 = vand.u32 %v52, 4294901760
  %927 = vmatpush2.msra.mxu0 %v926
  %928 = vmatprep.subr.mxu0 0.0
  %v929 = vand.u32 %v51, 4294901760
  %930 = vmatpush2.msra.mxu0 %v929
  %931 = vmatprep.subr.mxu0 0.0
  %v932 = vand.u32 %v50, 4294901760
  %933 = vmatpush2.msra.mxu0 %v932
  %934 = vmatprep.subr.mxu0 0.0
  %v935 = vand.u32 %v49, 4294901760
  %936 = vmatpush2.msra.mxu0 %v935
  %937 = vmatprep.subr.mxu0 0.0
  %v938 = vand.u32 %v48, 4294901760
  %939 = vmatpush2.msra.mxu0 %v938
  %940 = vmatprep.subr.mxu0 0.0
  %v941 = vand.u32 %v47, 4294901760
  %942 = vmatpush2.msra.mxu0 %v941
  %943 = vmatprep.subr.mxu0 0.0
  %v944 = vand.u32 %v46, 4294901760
  %945 = vmatpush2.msra.mxu0 %v944
  %946 = vmatprep.subr.mxu0 0.0
  %v947 = vand.u32 %v45, 4294901760
  %948 = vmatpush2.msra.mxu0 %v947
  %949 = vmatprep.subr.mxu0 0.0
  %v950 = vand.u32 %v44, 4294901760
  %951 = vmatpush2.msra.mxu0 %v950
  %952 = vmatprep.subr.mxu0 0.0
  %v953 = vand.u32 %v43, 4294901760
  %954 = vmatpush2.msra.mxu0 %v953
  %955 = vmatprep.subr.mxu0 0.0
  %v956 = vand.u32 %v42, 4294901760
  %957 = vmatpush2.msra.mxu0 %v956
  %958 = vmatprep.subr.mxu0 0.0
  %v959 = vand.u32 %v41, 4294901760
  %960 = vmatpush2.msra.mxu0 %v959
  %961 = vmatprep.subr.mxu0 0.0
  %v962 = vand.u32 %v40, 4294901760
  %963 = vmatpush2.msra.mxu0 %v962
  %964 = vmatprep.subr.mxu0 0.0
  %v965 = vand.u32 %v39, 4294901760
  %966 = vmatpush2.msra.mxu0 %v965
  %967 = vmatprep.subr.mxu0 0.0
  %v968 = vand.u32 %v38, 4294901760
  %969 = vmatpush2.msra.mxu0 %v968
  %970 = vmatprep.subr.mxu0 0.0
  %v971 = vand.u32 %v37, 4294901760
  %972 = vmatpush2.msra.mxu0 %v971
  %v973 = vand.u32 %v16, 4294901760
  %974 = vmatprep.mubr.f32.mxu0 %v973
  %v975 = vand.u32 %v15, 4294901760
  %976 = vmatmul.mubr.f32.gmra.mxu0 %v975
  %v977 = vpop.f32.mrf.mxu0
  %v978 = vadd.f32 %v874, %v977
  %v979 = vpop.f32.mrf.mxu0
  %980 = vdwg.mxu0
  %981 = vmatprep.subr.mxu0 0.0
  %v982 = vand.u32 %v68, 4294901760
  %983 = vmatpush1.msra.mxu0 %v982
  %984 = vmatprep.subr.mxu0 0.0
  %v985 = vand.u32 %v67, 4294901760
  %986 = vmatpush1.msra.mxu0 %v985
  %987 = vmatprep.subr.mxu0 0.0
  %v988 = vand.u32 %v66, 4294901760
  %989 = vmatpush1.msra.mxu0 %v988
  %990 = vmatprep.subr.mxu0 0.0
  %v991 = vand.u32 %v65, 4294901760
  %992 = vmatpush1.msra.mxu0 %v991
  %993 = vmatprep.subr.mxu0 0.0
  %v994 = vand.u32 %v64, 4294901760
  %995 = vmatpush1.msra.mxu0 %v994
  %996 = vmatprep.subr.mxu0 0.0
  %v997 = vand.u32 %v63, 4294901760
  %998 = vmatpush1.msra.mxu0 %v997
  %999 = vmatprep.subr.mxu0 0.0
  %v1000 = vand.u32 %v62, 4294901760
  %1001 = vmatpush1.msra.mxu0 %v1000
  %1002 = vmatprep.subr.mxu0 0.0
  %v1003 = vand.u32 %v61, 4294901760
  %1004 = vmatpush1.msra.mxu0 %v1003
  %1005 = vmatprep.subr.mxu0 0.0
  %v1006 = vand.u32 %v60, 4294901760
  %1007 = vmatpush1.msra.mxu0 %v1006
  %1008 = vmatprep.subr.mxu0 0.0
  %v1009 = vand.u32 %v59, 4294901760
  %1010 = vmatpush1.msra.mxu0 %v1009
  %1011 = vmatprep.subr.mxu0 0.0
  %v1012 = vand.u32 %v58, 4294901760
  %1013 = vmatpush1.msra.mxu0 %v1012
  %1014 = vmatprep.subr.mxu0 0.0
  %v1015 = vand.u32 %v57, 4294901760
  %1016 = vmatpush1.msra.mxu0 %v1015
  %1017 = vmatprep.subr.mxu0 0.0
  %v1018 = vand.u32 %v56, 4294901760
  %1019 = vmatpush1.msra.mxu0 %v1018
  %1020 = vmatprep.subr.mxu0 0.0
  %v1021 = vand.u32 %v55, 4294901760
  %1022 = vmatpush1.msra.mxu0 %v1021
  %1023 = vmatprep.subr.mxu0 0.0
  %v1024 = vand.u32 %v54, 4294901760
  %1025 = vmatpush1.msra.mxu0 %v1024
  %1026 = vmatprep.subr.mxu0 0.0
  %v1027 = vand.u32 %v53, 4294901760
  %1028 = vmatpush1.msra.mxu0 %v1027
  %1029 = vmatprep.subr.mxu0 0.0
  %v1030 = vand.u32 %v84, 4294901760
  %1031 = vmatpush2.msra.mxu0 %v1030
  %1032 = vmatprep.subr.mxu0 0.0
  %v1033 = vand.u32 %v83, 4294901760
  %1034 = vmatpush2.msra.mxu0 %v1033
  %1035 = vmatprep.subr.mxu0 0.0
  %v1036 = vand.u32 %v82, 4294901760
  %1037 = vmatpush2.msra.mxu0 %v1036
  %1038 = vmatprep.subr.mxu0 0.0
  %v1039 = vand.u32 %v81, 4294901760
  %1040 = vmatpush2.msra.mxu0 %v1039
  %1041 = vmatprep.subr.mxu0 0.0
  %v1042 = vand.u32 %v80, 4294901760
  %1043 = vmatpush2.msra.mxu0 %v1042
  %1044 = vmatprep.subr.mxu0 0.0
  %v1045 = vand.u32 %v79, 4294901760
  %1046 = vmatpush2.msra.mxu0 %v1045
  %1047 = vmatprep.subr.mxu0 0.0
  %v1048 = vand.u32 %v78, 4294901760
  %1049 = vmatpush2.msra.mxu0 %v1048
  %1050 = vmatprep.subr.mxu0 0.0
  %v1051 = vand.u32 %v77, 4294901760
  %1052 = vmatpush2.msra.mxu0 %v1051
  %1053 = vmatprep.subr.mxu0 0.0
  %v1054 = vand.u32 %v76, 4294901760
  %1055 = vmatpush2.msra.mxu0 %v1054
  %1056 = vmatprep.subr.mxu0 0.0
  %v1057 = vand.u32 %v75, 4294901760
  %1058 = vmatpush2.msra.mxu0 %v1057
  %1059 = vmatprep.subr.mxu0 0.0
  %v1060 = vand.u32 %v74, 4294901760
  %1061 = vmatpush2.msra.mxu0 %v1060
  %1062 = vmatprep.subr.mxu0 0.0
  %v1063 = vand.u32 %v73, 4294901760
  %1064 = vmatpush2.msra.mxu0 %v1063
  %1065 = vmatprep.subr.mxu0 0.0
  %v1066 = vand.u32 %v72, 4294901760
  %1067 = vmatpush2.msra.mxu0 %v1066
  %1068 = vmatprep.subr.mxu0 0.0
  %v1069 = vand.u32 %v71, 4294901760
  %1070 = vmatpush2.msra.mxu0 %v1069
  %1071 = vmatprep.subr.mxu0 0.0
  %v1072 = vand.u32 %v70, 4294901760
  %1073 = vmatpush2.msra.mxu0 %v1072
  %1074 = vmatprep.subr.mxu0 0.0
  %v1075 = vand.u32 %v69, 4294901760
  %1076 = vmatpush2.msra.mxu0 %v1075
  %v1077 = vand.u32 %v18, 4294901760
  %v1078 = vsub.f32 %v18, %v1077
  %v1079 = vand.u32 %v1078, 4294901760
  %v1080 = vsub.f32 %v1078, %v1079
  %v1081 = vand.u32 %v1080, 4294901760
  %1082 = vmatprep.mubr.f32.mxu0 %v1081
  %v1083 = vand.u32 %v17, 4294901760
  %v1084 = vsub.f32 %v17, %v1083
  %v1085 = vand.u32 %v1084, 4294901760
  %v1086 = vsub.f32 %v1084, %v1085
  %v1087 = vand.u32 %v1086, 4294901760
  %1088 = vmatmul.mubr.f32.gmra.mxu0 %v1087
  %v1089 = vpop.f32.mrf.mxu0
  %v1090 = vadd.f32 %v978, %v1089
  %v1091 = vpop.f32.mrf.mxu0
  %1092 = vdwg.mxu0
  %1093 = vmatprep.subr.mxu0 0.0
  %v1094 = vand.u32 %v68, 4294901760
  %v1095 = vsub.f32 %v68, %v1094
  %v1096 = vand.u32 %v1095, 4294901760
  %v1097 = vsub.f32 %v1095, %v1096
  %v1098 = vand.u32 %v1097, 4294901760
  %1099 = vmatpush1.msra.mxu0 %v1098
  %1100 = vmatprep.subr.mxu0 0.0
  %v1101 = vand.u32 %v67, 4294901760
  %v1102 = vsub.f32 %v67, %v1101
  %v1103 = vand.u32 %v1102, 4294901760
  %v1104 = vsub.f32 %v1102, %v1103
  %v1105 = vand.u32 %v1104, 4294901760
  %1106 = vmatpush1.msra.mxu0 %v1105
  %1107 = vmatprep.subr.mxu0 0.0
  %v1108 = vand.u32 %v66, 4294901760
  %v1109 = vsub.f32 %v66, %v1108
  %v1110 = vand.u32 %v1109, 4294901760
  %v1111 = vsub.f32 %v1109, %v1110
  %v1112 = vand.u32 %v1111, 4294901760
  %1113 = vmatpush1.msra.mxu0 %v1112
  %1114 = vmatprep.subr.mxu0 0.0
  %v1115 = vand.u32 %v65, 4294901760
  %v1116 = vsub.f32 %v65, %v1115
  %v1117 = vand.u32 %v1116, 4294901760
  %v1118 = vsub.f32 %v1116, %v1117
  %v1119 = vand.u32 %v1118, 4294901760
  %1120 = vmatpush1.msra.mxu0 %v1119
  %1121 = vmatprep.subr.mxu0 0.0
  %v1122 = vand.u32 %v64, 4294901760
  %v1123 = vsub.f32 %v64, %v1122
  %v1124 = vand.u32 %v1123, 4294901760
  %v1125 = vsub.f32 %v1123, %v1124
  %v1126 = vand.u32 %v1125, 4294901760
  %1127 = vmatpush1.msra.mxu0 %v1126
  %1128 = vmatprep.subr.mxu0 0.0
  %v1129 = vand.u32 %v63, 4294901760
  %v1130 = vsub.f32 %v63, %v1129
  %v1131 = vand.u32 %v1130, 4294901760
  %v1132 = vsub.f32 %v1130, %v1131
  %v1133 = vand.u32 %v1132, 4294901760
  %1134 = vmatpush1.msra.mxu0 %v1133
  %1135 = vmatprep.subr.mxu0 0.0
  %v1136 = vand.u32 %v62, 4294901760
  %v1137 = vsub.f32 %v62, %v1136
  %v1138 = vand.u32 %v1137, 4294901760
  %v1139 = vsub.f32 %v1137, %v1138
  %v1140 = vand.u32 %v1139, 4294901760
  %1141 = vmatpush1.msra.mxu0 %v1140
  %1142 = vmatprep.subr.mxu0 0.0
  %v1143 = vand.u32 %v61, 4294901760
  %v1144 = vsub.f32 %v61, %v1143
  %v1145 = vand.u32 %v1144, 4294901760
  %v1146 = vsub.f32 %v1144, %v1145
  %v1147 = vand.u32 %v1146, 4294901760
  %1148 = vmatpush1.msra.mxu0 %v1147
  %1149 = vmatprep.subr.mxu0 0.0
  %v1150 = vand.u32 %v60, 4294901760
  %v1151 = vsub.f32 %v60, %v1150
  %v1152 = vand.u32 %v1151, 4294901760
  %v1153 = vsub.f32 %v1151, %v1152
  %v1154 = vand.u32 %v1153, 4294901760
  %1155 = vmatpush1.msra.mxu0 %v1154
  %1156 = vmatprep.subr.mxu0 0.0
  %v1157 = vand.u32 %v59, 4294901760
  %v1158 = vsub.f32 %v59, %v1157
  %v1159 = vand.u32 %v1158, 4294901760
  %v1160 = vsub.f32 %v1158, %v1159
  %v1161 = vand.u32 %v1160, 4294901760
  %1162 = vmatpush1.msra.mxu0 %v1161
  %1163 = vmatprep.subr.mxu0 0.0
  %v1164 = vand.u32 %v58, 4294901760
  %v1165 = vsub.f32 %v58, %v1164
  %v1166 = vand.u32 %v1165, 4294901760
  %v1167 = vsub.f32 %v1165, %v1166
  %v1168 = vand.u32 %v1167, 4294901760
  %1169 = vmatpush1.msra.mxu0 %v1168
  %1170 = vmatprep.subr.mxu0 0.0
  %v1171 = vand.u32 %v57, 4294901760
  %v1172 = vsub.f32 %v57, %v1171
  %v1173 = vand.u32 %v1172, 4294901760
  %v1174 = vsub.f32 %v1172, %v1173
  %v1175 = vand.u32 %v1174, 4294901760
  %1176 = vmatpush1.msra.mxu0 %v1175
  %1177 = vmatprep.subr.mxu0 0.0
  %v1178 = vand.u32 %v56, 4294901760
  %v1179 = vsub.f32 %v56, %v1178
  %v1180 = vand.u32 %v1179, 4294901760
  %v1181 = vsub.f32 %v1179, %v1180
  %v1182 = vand.u32 %v1181, 4294901760
  %1183 = vmatpush1.msra.mxu0 %v1182
  %1184 = vmatprep.subr.mxu0 0.0
  %v1185 = vand.u32 %v55, 4294901760
  %v1186 = vsub.f32 %v55, %v1185
  %v1187 = vand.u32 %v1186, 4294901760
  %v1188 = vsub.f32 %v1186, %v1187
  %v1189 = vand.u32 %v1188, 4294901760
  %1190 = vmatpush1.msra.mxu0 %v1189
  %1191 = vmatprep.subr.mxu0 0.0
  %v1192 = vand.u32 %v54, 4294901760
  %v1193 = vsub.f32 %v54, %v1192
  %v1194 = vand.u32 %v1193, 4294901760
  %v1195 = vsub.f32 %v1193, %v1194
  %v1196 = vand.u32 %v1195, 4294901760
  %1197 = vmatpush1.msra.mxu0 %v1196
  %1198 = vmatprep.subr.mxu0 0.0
  %v1199 = vand.u32 %v53, 4294901760
  %v1200 = vsub.f32 %v53, %v1199
  %v1201 = vand.u32 %v1200, 4294901760
  %v1202 = vsub.f32 %v1200, %v1201
  %v1203 = vand.u32 %v1202, 4294901760
  %1204 = vmatpush1.msra.mxu0 %v1203
  %1205 = vmatprep.subr.mxu0 0.0
  %v1206 = vand.u32 %v84, 4294901760
  %v1207 = vsub.f32 %v84, %v1206
  %v1208 = vand.u32 %v1207, 4294901760
  %v1209 = vsub.f32 %v1207, %v1208
  %v1210 = vand.u32 %v1209, 4294901760
  %1211 = vmatpush2.msra.mxu0 %v1210
  %1212 = vmatprep.subr.mxu0 0.0
  %v1213 = vand.u32 %v83, 4294901760
  %v1214 = vsub.f32 %v83, %v1213
  %v1215 = vand.u32 %v1214, 4294901760
  %v1216 = vsub.f32 %v1214, %v1215
  %v1217 = vand.u32 %v1216, 4294901760
  %1218 = vmatpush2.msra.mxu0 %v1217
  %1219 = vmatprep.subr.mxu0 0.0
  %v1220 = vand.u32 %v82, 4294901760
  %v1221 = vsub.f32 %v82, %v1220
  %v1222 = vand.u32 %v1221, 4294901760
  %v1223 = vsub.f32 %v1221, %v1222
  %v1224 = vand.u32 %v1223, 4294901760
  %1225 = vmatpush2.msra.mxu0 %v1224
  %1226 = vmatprep.subr.mxu0 0.0
  %v1227 = vand.u32 %v81, 4294901760
  %v1228 = vsub.f32 %v81, %v1227
  %v1229 = vand.u32 %v1228, 4294901760
  %v1230 = vsub.f32 %v1228, %v1229
  %v1231 = vand.u32 %v1230, 4294901760
  %1232 = vmatpush2.msra.mxu0 %v1231
  %1233 = vmatprep.subr.mxu0 0.0
  %v1234 = vand.u32 %v80, 4294901760
  %v1235 = vsub.f32 %v80, %v1234
  %v1236 = vand.u32 %v1235, 4294901760
  %v1237 = vsub.f32 %v1235, %v1236
  %v1238 = vand.u32 %v1237, 4294901760
  %1239 = vmatpush2.msra.mxu0 %v1238
  %1240 = vmatprep.subr.mxu0 0.0
  %v1241 = vand.u32 %v79, 4294901760
  %v1242 = vsub.f32 %v79, %v1241
  %v1243 = vand.u32 %v1242, 4294901760
  %v1244 = vsub.f32 %v1242, %v1243
  %v1245 = vand.u32 %v1244, 4294901760
  %1246 = vmatpush2.msra.mxu0 %v1245
  %1247 = vmatprep.subr.mxu0 0.0
  %v1248 = vand.u32 %v78, 4294901760
  %v1249 = vsub.f32 %v78, %v1248
  %v1250 = vand.u32 %v1249, 4294901760
  %v1251 = vsub.f32 %v1249, %v1250
  %v1252 = vand.u32 %v1251, 4294901760
  %1253 = vmatpush2.msra.mxu0 %v1252
  %1254 = vmatprep.subr.mxu0 0.0
  %v1255 = vand.u32 %v77, 4294901760
  %v1256 = vsub.f32 %v77, %v1255
  %v1257 = vand.u32 %v1256, 4294901760
  %v1258 = vsub.f32 %v1256, %v1257
  %v1259 = vand.u32 %v1258, 4294901760
  %1260 = vmatpush2.msra.mxu0 %v1259
  %1261 = vmatprep.subr.mxu0 0.0
  %v1262 = vand.u32 %v76, 4294901760
  %v1263 = vsub.f32 %v76, %v1262
  %v1264 = vand.u32 %v1263, 4294901760
  %v1265 = vsub.f32 %v1263, %v1264
  %v1266 = vand.u32 %v1265, 4294901760
  %1267 = vmatpush2.msra.mxu0 %v1266
  %1268 = vmatprep.subr.mxu0 0.0
  %v1269 = vand.u32 %v75, 4294901760
  %v1270 = vsub.f32 %v75, %v1269
  %v1271 = vand.u32 %v1270, 4294901760
  %v1272 = vsub.f32 %v1270, %v1271
  %v1273 = vand.u32 %v1272, 4294901760
  %1274 = vmatpush2.msra.mxu0 %v1273
  %1275 = vmatprep.subr.mxu0 0.0
  %v1276 = vand.u32 %v74, 4294901760
  %v1277 = vsub.f32 %v74, %v1276
  %v1278 = vand.u32 %v1277, 4294901760
  %v1279 = vsub.f32 %v1277, %v1278
  %v1280 = vand.u32 %v1279, 4294901760
  %1281 = vmatpush2.msra.mxu0 %v1280
  %1282 = vmatprep.subr.mxu0 0.0
  %v1283 = vand.u32 %v73, 4294901760
  %v1284 = vsub.f32 %v73, %v1283
  %v1285 = vand.u32 %v1284, 4294901760
  %v1286 = vsub.f32 %v1284, %v1285
  %v1287 = vand.u32 %v1286, 4294901760
  %1288 = vmatpush2.msra.mxu0 %v1287
  %1289 = vmatprep.subr.mxu0 0.0
  %v1290 = vand.u32 %v72, 4294901760
  %v1291 = vsub.f32 %v72, %v1290
  %v1292 = vand.u32 %v1291, 4294901760
  %v1293 = vsub.f32 %v1291, %v1292
  %v1294 = vand.u32 %v1293, 4294901760
  %1295 = vmatpush2.msra.mxu0 %v1294
  %1296 = vmatprep.subr.mxu0 0.0
  %v1297 = vand.u32 %v71, 4294901760
  %v1298 = vsub.f32 %v71, %v1297
  %v1299 = vand.u32 %v1298, 4294901760
  %v1300 = vsub.f32 %v1298, %v1299
  %v1301 = vand.u32 %v1300, 4294901760
  %1302 = vmatpush2.msra.mxu0 %v1301
  %1303 = vmatprep.subr.mxu0 0.0
  %v1304 = vand.u32 %v70, 4294901760
  %v1305 = vsub.f32 %v70, %v1304
  %v1306 = vand.u32 %v1305, 4294901760
  %v1307 = vsub.f32 %v1305, %v1306
  %v1308 = vand.u32 %v1307, 4294901760
  %1309 = vmatpush2.msra.mxu0 %v1308
  %1310 = vmatprep.subr.mxu0 0.0
  %v1311 = vand.u32 %v69, 4294901760
  %v1312 = vsub.f32 %v69, %v1311
  %v1313 = vand.u32 %v1312, 4294901760
  %v1314 = vsub.f32 %v1312, %v1313
  %v1315 = vand.u32 %v1314, 4294901760
  %1316 = vmatpush2.msra.mxu0 %v1315
  %v1317 = vand.u32 %v18, 4294901760
  %1318 = vmatprep.mubr.f32.mxu0 %v1317
  %v1319 = vand.u32 %v17, 4294901760
  %1320 = vmatmul.mubr.f32.gmra.mxu0 %v1319
  %v1321 = vpop.f32.mrf.mxu0
  %v1322 = vadd.f32 %v1090, %v1321
  %v1323 = vpop.f32.mrf.mxu0
  %1324 = vdwg.mxu0
  %1325 = vmatprep.subr.mxu0 0.0
  %v1326 = vand.u32 %v68, 4294901760
  %v1327 = vsub.f32 %v68, %v1326
  %1328 = vmatpush1.msra.mxu0 %v1327
  %1329 = vmatprep.subr.mxu0 0.0
  %v1330 = vand.u32 %v67, 4294901760
  %v1331 = vsub.f32 %v67, %v1330
  %1332 = vmatpush1.msra.mxu0 %v1331
  %1333 = vmatprep.subr.mxu0 0.0
  %v1334 = vand.u32 %v66, 4294901760
  %v1335 = vsub.f32 %v66, %v1334
  %1336 = vmatpush1.msra.mxu0 %v1335
  %1337 = vmatprep.subr.mxu0 0.0
  %v1338 = vand.u32 %v65, 4294901760
  %v1339 = vsub.f32 %v65, %v1338
  %1340 = vmatpush1.msra.mxu0 %v1339
  %1341 = vmatprep.subr.mxu0 0.0
  %v1342 = vand.u32 %v64, 4294901760
  %v1343 = vsub.f32 %v64, %v1342
  %1344 = vmatpush1.msra.mxu0 %v1343
  %1345 = vmatprep.subr.mxu0 0.0
  %v1346 = vand.u32 %v63, 4294901760
  %v1347 = vsub.f32 %v63, %v1346
  %1348 = vmatpush1.msra.mxu0 %v1347
  %1349 = vmatprep.subr.mxu0 0.0
  %v1350 = vand.u32 %v62, 4294901760
  %v1351 = vsub.f32 %v62, %v1350
  %1352 = vmatpush1.msra.mxu0 %v1351
  %1353 = vmatprep.subr.mxu0 0.0
  %v1354 = vand.u32 %v61, 4294901760
  %v1355 = vsub.f32 %v61, %v1354
  %1356 = vmatpush1.msra.mxu0 %v1355
  %1357 = vmatprep.subr.mxu0 0.0
  %v1358 = vand.u32 %v60, 4294901760
  %v1359 = vsub.f32 %v60, %v1358
  %1360 = vmatpush1.msra.mxu0 %v1359
  %1361 = vmatprep.subr.mxu0 0.0
  %v1362 = vand.u32 %v59, 4294901760
  %v1363 = vsub.f32 %v59, %v1362
  %1364 = vmatpush1.msra.mxu0 %v1363
  %1365 = vmatprep.subr.mxu0 0.0
  %v1366 = vand.u32 %v58, 4294901760
  %v1367 = vsub.f32 %v58, %v1366
  %1368 = vmatpush1.msra.mxu0 %v1367
  %1369 = vmatprep.subr.mxu0 0.0
  %v1370 = vand.u32 %v57, 4294901760
  %v1371 = vsub.f32 %v57, %v1370
  %1372 = vmatpush1.msra.mxu0 %v1371
  %1373 = vmatprep.subr.mxu0 0.0
  %v1374 = vand.u32 %v56, 4294901760
  %v1375 = vsub.f32 %v56, %v1374
  %1376 = vmatpush1.msra.mxu0 %v1375
  %1377 = vmatprep.subr.mxu0 0.0
  %v1378 = vand.u32 %v55, 4294901760
  %v1379 = vsub.f32 %v55, %v1378
  %1380 = vmatpush1.msra.mxu0 %v1379
  %1381 = vmatprep.subr.mxu0 0.0
  %v1382 = vand.u32 %v54, 4294901760
  %v1383 = vsub.f32 %v54, %v1382
  %1384 = vmatpush1.msra.mxu0 %v1383
  %1385 = vmatprep.subr.mxu0 0.0
  %v1386 = vand.u32 %v53, 4294901760
  %v1387 = vsub.f32 %v53, %v1386
  %1388 = vmatpush1.msra.mxu0 %v1387
  %1389 = vmatprep.subr.mxu0 0.0
  %v1390 = vand.u32 %v84, 4294901760
  %v1391 = vsub.f32 %v84, %v1390
  %1392 = vmatpush2.msra.mxu0 %v1391
  %1393 = vmatprep.subr.mxu0 0.0
  %v1394 = vand.u32 %v83, 4294901760
  %v1395 = vsub.f32 %v83, %v1394
  %1396 = vmatpush2.msra.mxu0 %v1395
  %1397 = vmatprep.subr.mxu0 0.0
  %v1398 = vand.u32 %v82, 4294901760
  %v1399 = vsub.f32 %v82, %v1398
  %1400 = vmatpush2.msra.mxu0 %v1399
  %1401 = vmatprep.subr.mxu0 0.0
  %v1402 = vand.u32 %v81, 4294901760
  %v1403 = vsub.f32 %v81, %v1402
  %1404 = vmatpush2.msra.mxu0 %v1403
  %1405 = vmatprep.subr.mxu0 0.0
  %v1406 = vand.u32 %v80, 4294901760
  %v1407 = vsub.f32 %v80, %v1406
  %1408 = vmatpush2.msra.mxu0 %v1407
  %1409 = vmatprep.subr.mxu0 0.0
  %v1410 = vand.u32 %v79, 4294901760
  %v1411 = vsub.f32 %v79, %v1410
  %1412 = vmatpush2.msra.mxu0 %v1411
  %1413 = vmatprep.subr.mxu0 0.0
  %v1414 = vand.u32 %v78, 4294901760
  %v1415 = vsub.f32 %v78, %v1414
  %1416 = vmatpush2.msra.mxu0 %v1415
  %1417 = vmatprep.subr.mxu0 0.0
  %v1418 = vand.u32 %v77, 4294901760
  %v1419 = vsub.f32 %v77, %v1418
  %1420 = vmatpush2.msra.mxu0 %v1419
  %1421 = vmatprep.subr.mxu0 0.0
  %v1422 = vand.u32 %v76, 4294901760
  %v1423 = vsub.f32 %v76, %v1422
  %1424 = vmatpush2.msra.mxu0 %v1423
  %1425 = vmatprep.subr.mxu0 0.0
  %v1426 = vand.u32 %v75, 4294901760
  %v1427 = vsub.f32 %v75, %v1426
  %1428 = vmatpush2.msra.mxu0 %v1427
  %1429 = vmatprep.subr.mxu0 0.0
  %v1430 = vand.u32 %v74, 4294901760
  %v1431 = vsub.f32 %v74, %v1430
  %1432 = vmatpush2.msra.mxu0 %v1431
  %1433 = vmatprep.subr.mxu0 0.0
  %v1434 = vand.u32 %v73, 4294901760
  %v1435 = vsub.f32 %v73, %v1434
  %1436 = vmatpush2.msra.mxu0 %v1435
  %1437 = vmatprep.subr.mxu0 0.0
  %v1438 = vand.u32 %v72, 4294901760
  %v1439 = vsub.f32 %v72, %v1438
  %1440 = vmatpush2.msra.mxu0 %v1439
  %1441 = vmatprep.subr.mxu0 0.0
  %v1442 = vand.u32 %v71, 4294901760
  %v1443 = vsub.f32 %v71, %v1442
  %1444 = vmatpush2.msra.mxu0 %v1443
  %1445 = vmatprep.subr.mxu0 0.0
  %v1446 = vand.u32 %v70, 4294901760
  %v1447 = vsub.f32 %v70, %v1446
  %1448 = vmatpush2.msra.mxu0 %v1447
  %1449 = vmatprep.subr.mxu0 0.0
  %v1450 = vand.u32 %v69, 4294901760
  %v1451 = vsub.f32 %v69, %v1450
  %1452 = vmatpush2.msra.mxu0 %v1451
  %v1453 = vand.u32 %v18, 4294901760
  %v1454 = vsub.f32 %v18, %v1453
  %1455 = vmatprep.mubr.f32.mxu0 %v1454
  %v1456 = vand.u32 %v17, 4294901760
  %v1457 = vsub.f32 %v17, %v1456
  %1458 = vmatmul.mubr.f32.gmra.mxu0 %v1457
  %v1459 = vpop.f32.mrf.mxu0
  %v1460 = vadd.f32 %v1322, %v1459
  %v1461 = vpop.f32.mrf.mxu0
  %1462 = vdwg.mxu0
  %1463 = vmatprep.subr.mxu0 0.0
  %v1464 = vand.u32 %v68, 4294901760
  %1465 = vmatpush1.msra.mxu0 %v1464
  %1466 = vmatprep.subr.mxu0 0.0
  %v1467 = vand.u32 %v67, 4294901760
  %1468 = vmatpush1.msra.mxu0 %v1467
  %1469 = vmatprep.subr.mxu0 0.0
  %v1470 = vand.u32 %v66, 4294901760
  %1471 = vmatpush1.msra.mxu0 %v1470
  %1472 = vmatprep.subr.mxu0 0.0
  %v1473 = vand.u32 %v65, 4294901760
  %1474 = vmatpush1.msra.mxu0 %v1473
  %1475 = vmatprep.subr.mxu0 0.0
  %v1476 = vand.u32 %v64, 4294901760
  %1477 = vmatpush1.msra.mxu0 %v1476
  %1478 = vmatprep.subr.mxu0 0.0
  %v1479 = vand.u32 %v63, 4294901760
  %1480 = vmatpush1.msra.mxu0 %v1479
  %1481 = vmatprep.subr.mxu0 0.0
  %v1482 = vand.u32 %v62, 4294901760
  %1483 = vmatpush1.msra.mxu0 %v1482
  %1484 = vmatprep.subr.mxu0 0.0
  %v1485 = vand.u32 %v61, 4294901760
  %1486 = vmatpush1.msra.mxu0 %v1485
  %1487 = vmatprep.subr.mxu0 0.0
  %v1488 = vand.u32 %v60, 4294901760
  %1489 = vmatpush1.msra.mxu0 %v1488
  %1490 = vmatprep.subr.mxu0 0.0
  %v1491 = vand.u32 %v59, 4294901760
  %1492 = vmatpush1.msra.mxu0 %v1491
  %1493 = vmatprep.subr.mxu0 0.0
  %v1494 = vand.u32 %v58, 4294901760
  %1495 = vmatpush1.msra.mxu0 %v1494
  %1496 = vmatprep.subr.mxu0 0.0
  %v1497 = vand.u32 %v57, 4294901760
  %1498 = vmatpush1.msra.mxu0 %v1497
  %1499 = vmatprep.subr.mxu0 0.0
  %v1500 = vand.u32 %v56, 4294901760
  %1501 = vmatpush1.msra.mxu0 %v1500
  %1502 = vmatprep.subr.mxu0 0.0
  %v1503 = vand.u32 %v55, 4294901760
  %1504 = vmatpush1.msra.mxu0 %v1503
  %1505 = vmatprep.subr.mxu0 0.0
  %v1506 = vand.u32 %v54, 4294901760
  %1507 = vmatpush1.msra.mxu0 %v1506
  %1508 = vmatprep.subr.mxu0 0.0
  %v1509 = vand.u32 %v53, 4294901760
  %1510 = vmatpush1.msra.mxu0 %v1509
  %1511 = vmatprep.subr.mxu0 0.0
  %v1512 = vand.u32 %v84, 4294901760
  %1513 = vmatpush2.msra.mxu0 %v1512
  %1514 = vmatprep.subr.mxu0 0.0
  %v1515 = vand.u32 %v83, 4294901760
  %1516 = vmatpush2.msra.mxu0 %v1515
  %1517 = vmatprep.subr.mxu0 0.0
  %v1518 = vand.u32 %v82, 4294901760
  %1519 = vmatpush2.msra.mxu0 %v1518
  %1520 = vmatprep.subr.mxu0 0.0
  %v1521 = vand.u32 %v81, 4294901760
  %1522 = vmatpush2.msra.mxu0 %v1521
  %1523 = vmatprep.subr.mxu0 0.0
  %v1524 = vand.u32 %v80, 4294901760
  %1525 = vmatpush2.msra.mxu0 %v1524
  %1526 = vmatprep.subr.mxu0 0.0
  %v1527 = vand.u32 %v79, 4294901760
  %1528 = vmatpush2.msra.mxu0 %v1527
  %1529 = vmatprep.subr.mxu0 0.0
  %v1530 = vand.u32 %v78, 4294901760
  %1531 = vmatpush2.msra.mxu0 %v1530
  %1532 = vmatprep.subr.mxu0 0.0
  %v1533 = vand.u32 %v77, 4294901760
  %1534 = vmatpush2.msra.mxu0 %v1533
  %1535 = vmatprep.subr.mxu0 0.0
  %v1536 = vand.u32 %v76, 4294901760
  %1537 = vmatpush2.msra.mxu0 %v1536
  %1538 = vmatprep.subr.mxu0 0.0
  %v1539 = vand.u32 %v75, 4294901760
  %1540 = vmatpush2.msra.mxu0 %v1539
  %1541 = vmatprep.subr.mxu0 0.0
  %v1542 = vand.u32 %v74, 4294901760
  %1543 = vmatpush2.msra.mxu0 %v1542
  %1544 = vmatprep.subr.mxu0 0.0
  %v1545 = vand.u32 %v73, 4294901760
  %1546 = vmatpush2.msra.mxu0 %v1545
  %1547 = vmatprep.subr.mxu0 0.0
  %v1548 = vand.u32 %v72, 4294901760
  %1549 = vmatpush2.msra.mxu0 %v1548
  %1550 = vmatprep.subr.mxu0 0.0
  %v1551 = vand.u32 %v71, 4294901760
  %1552 = vmatpush2.msra.mxu0 %v1551
  %1553 = vmatprep.subr.mxu0 0.0
  %v1554 = vand.u32 %v70, 4294901760
  %1555 = vmatpush2.msra.mxu0 %v1554
  %1556 = vmatprep.subr.mxu0 0.0
  %v1557 = vand.u32 %v69, 4294901760
  %1558 = vmatpush2.msra.mxu0 %v1557
  %v1559 = vand.u32 %v18, 4294901760
  %v1560 = vsub.f32 %v18, %v1559
  %v1561 = vand.u32 %v1560, 4294901760
  %1562 = vmatprep.mubr.f32.mxu0 %v1561
  %v1563 = vand.u32 %v17, 4294901760
  %v1564 = vsub.f32 %v17, %v1563
  %v1565 = vand.u32 %v1564, 4294901760
  %1566 = vmatmul.mubr.f32.gmra.mxu0 %v1565
  %v1567 = vpop.f32.mrf.mxu0
  %v1568 = vadd.f32 %v1460, %v1567
  %v1569 = vpop.f32.mrf.mxu0
  %1570 = vdwg.mxu0
  %1571 = vmatprep.subr.mxu0 0.0
  %v1572 = vand.u32 %v68, 4294901760
  %v1573 = vsub.f32 %v68, %v1572
  %v1574 = vand.u32 %v1573, 4294901760
  %1575 = vmatpush1.msra.mxu0 %v1574
  %1576 = vmatprep.subr.mxu0 0.0
  %v1577 = vand.u32 %v67, 4294901760
  %v1578 = vsub.f32 %v67, %v1577
  %v1579 = vand.u32 %v1578, 4294901760
  %1580 = vmatpush1.msra.mxu0 %v1579
  %1581 = vmatprep.subr.mxu0 0.0
  %v1582 = vand.u32 %v66, 4294901760
  %v1583 = vsub.f32 %v66, %v1582
  %v1584 = vand.u32 %v1583, 4294901760
  %1585 = vmatpush1.msra.mxu0 %v1584
  %1586 = vmatprep.subr.mxu0 0.0
  %v1587 = vand.u32 %v65, 4294901760
  %v1588 = vsub.f32 %v65, %v1587
  %v1589 = vand.u32 %v1588, 4294901760
  %1590 = vmatpush1.msra.mxu0 %v1589
  %1591 = vmatprep.subr.mxu0 0.0
  %v1592 = vand.u32 %v64, 4294901760
  %v1593 = vsub.f32 %v64, %v1592
  %v1594 = vand.u32 %v1593, 4294901760
  %1595 = vmatpush1.msra.mxu0 %v1594
  %1596 = vmatprep.subr.mxu0 0.0
  %v1597 = vand.u32 %v63, 4294901760
  %v1598 = vsub.f32 %v63, %v1597
  %v1599 = vand.u32 %v1598, 4294901760
  %1600 = vmatpush1.msra.mxu0 %v1599
  %1601 = vmatprep.subr.mxu0 0.0
  %v1602 = vand.u32 %v62, 4294901760
  %v1603 = vsub.f32 %v62, %v1602
  %v1604 = vand.u32 %v1603, 4294901760
  %1605 = vmatpush1.msra.mxu0 %v1604
  %1606 = vmatprep.subr.mxu0 0.0
  %v1607 = vand.u32 %v61, 4294901760
  %v1608 = vsub.f32 %v61, %v1607
  %v1609 = vand.u32 %v1608, 4294901760
  %1610 = vmatpush1.msra.mxu0 %v1609
  %1611 = vmatprep.subr.mxu0 0.0
  %v1612 = vand.u32 %v60, 4294901760
  %v1613 = vsub.f32 %v60, %v1612
  %v1614 = vand.u32 %v1613, 4294901760
  %1615 = vmatpush1.msra.mxu0 %v1614
  %1616 = vmatprep.subr.mxu0 0.0
  %v1617 = vand.u32 %v59, 4294901760
  %v1618 = vsub.f32 %v59, %v1617
  %v1619 = vand.u32 %v1618, 4294901760
  %1620 = vmatpush1.msra.mxu0 %v1619
  %1621 = vmatprep.subr.mxu0 0.0
  %v1622 = vand.u32 %v58, 4294901760
  %v1623 = vsub.f32 %v58, %v1622
  %v1624 = vand.u32 %v1623, 4294901760
  %1625 = vmatpush1.msra.mxu0 %v1624
  %1626 = vmatprep.subr.mxu0 0.0
  %v1627 = vand.u32 %v57, 4294901760
  %v1628 = vsub.f32 %v57, %v1627
  %v1629 = vand.u32 %v1628, 4294901760
  %1630 = vmatpush1.msra.mxu0 %v1629
  %1631 = vmatprep.subr.mxu0 0.0
  %v1632 = vand.u32 %v56, 4294901760
  %v1633 = vsub.f32 %v56, %v1632
  %v1634 = vand.u32 %v1633, 4294901760
  %1635 = vmatpush1.msra.mxu0 %v1634
  %1636 = vmatprep.subr.mxu0 0.0
  %v1637 = vand.u32 %v55, 4294901760
  %v1638 = vsub.f32 %v55, %v1637
  %v1639 = vand.u32 %v1638, 4294901760
  %1640 = vmatpush1.msra.mxu0 %v1639
  %1641 = vmatprep.subr.mxu0 0.0
  %v1642 = vand.u32 %v54, 4294901760
  %v1643 = vsub.f32 %v54, %v1642
  %v1644 = vand.u32 %v1643, 4294901760
  %1645 = vmatpush1.msra.mxu0 %v1644
  %1646 = vmatprep.subr.mxu0 0.0
  %v1647 = vand.u32 %v53, 4294901760
  %v1648 = vsub.f32 %v53, %v1647
  %v1649 = vand.u32 %v1648, 4294901760
  %1650 = vmatpush1.msra.mxu0 %v1649
  %1651 = vmatprep.subr.mxu0 0.0
  %v1652 = vand.u32 %v84, 4294901760
  %v1653 = vsub.f32 %v84, %v1652
  %v1654 = vand.u32 %v1653, 4294901760
  %1655 = vmatpush2.msra.mxu0 %v1654
  %1656 = vmatprep.subr.mxu0 0.0
  %v1657 = vand.u32 %v83, 4294901760
  %v1658 = vsub.f32 %v83, %v1657
  %v1659 = vand.u32 %v1658, 4294901760
  %1660 = vmatpush2.msra.mxu0 %v1659
  %1661 = vmatprep.subr.mxu0 0.0
  %v1662 = vand.u32 %v82, 4294901760
  %v1663 = vsub.f32 %v82, %v1662
  %v1664 = vand.u32 %v1663, 4294901760
  %1665 = vmatpush2.msra.mxu0 %v1664
  %1666 = vmatprep.subr.mxu0 0.0
  %v1667 = vand.u32 %v81, 4294901760
  %v1668 = vsub.f32 %v81, %v1667
  %v1669 = vand.u32 %v1668, 4294901760
  %1670 = vmatpush2.msra.mxu0 %v1669
  %1671 = vmatprep.subr.mxu0 0.0
  %v1672 = vand.u32 %v80, 4294901760
  %v1673 = vsub.f32 %v80, %v1672
  %v1674 = vand.u32 %v1673, 4294901760
  %1675 = vmatpush2.msra.mxu0 %v1674
  %1676 = vmatprep.subr.mxu0 0.0
  %v1677 = vand.u32 %v79, 4294901760
  %v1678 = vsub.f32 %v79, %v1677
  %v1679 = vand.u32 %v1678, 4294901760
  %1680 = vmatpush2.msra.mxu0 %v1679
  %1681 = vmatprep.subr.mxu0 0.0
  %v1682 = vand.u32 %v78, 4294901760
  %v1683 = vsub.f32 %v78, %v1682
  %v1684 = vand.u32 %v1683, 4294901760
  %1685 = vmatpush2.msra.mxu0 %v1684
  %1686 = vmatprep.subr.mxu0 0.0
  %v1687 = vand.u32 %v77, 4294901760
  %v1688 = vsub.f32 %v77, %v1687
  %v1689 = vand.u32 %v1688, 4294901760
  %1690 = vmatpush2.msra.mxu0 %v1689
  %1691 = vmatprep.subr.mxu0 0.0
  %v1692 = vand.u32 %v76, 4294901760
  %v1693 = vsub.f32 %v76, %v1692
  %v1694 = vand.u32 %v1693, 4294901760
  %1695 = vmatpush2.msra.mxu0 %v1694
  %1696 = vmatprep.subr.mxu0 0.0
  %v1697 = vand.u32 %v75, 4294901760
  %v1698 = vsub.f32 %v75, %v1697
  %v1699 = vand.u32 %v1698, 4294901760
  %1700 = vmatpush2.msra.mxu0 %v1699
  %1701 = vmatprep.subr.mxu0 0.0
  %v1702 = vand.u32 %v74, 4294901760
  %v1703 = vsub.f32 %v74, %v1702
  %v1704 = vand.u32 %v1703, 4294901760
  %1705 = vmatpush2.msra.mxu0 %v1704
  %1706 = vmatprep.subr.mxu0 0.0
  %v1707 = vand.u32 %v73, 4294901760
  %v1708 = vsub.f32 %v73, %v1707
  %v1709 = vand.u32 %v1708, 4294901760
  %1710 = vmatpush2.msra.mxu0 %v1709
  %1711 = vmatprep.subr.mxu0 0.0
  %v1712 = vand.u32 %v72, 4294901760
  %v1713 = vsub.f32 %v72, %v1712
  %v1714 = vand.u32 %v1713, 4294901760
  %1715 = vmatpush2.msra.mxu0 %v1714
  %1716 = vmatprep.subr.mxu0 0.0
  %v1717 = vand.u32 %v71, 4294901760
  %v1718 = vsub.f32 %v71, %v1717
  %v1719 = vand.u32 %v1718, 4294901760
  %1720 = vmatpush2.msra.mxu0 %v1719
  %1721 = vmatprep.subr.mxu0 0.0
  %v1722 = vand.u32 %v70, 4294901760
  %v1723 = vsub.f32 %v70, %v1722
  %v1724 = vand.u32 %v1723, 4294901760
  %1725 = vmatpush2.msra.mxu0 %v1724
  %1726 = vmatprep.subr.mxu0 0.0
  %v1727 = vand.u32 %v69, 4294901760
  %v1728 = vsub.f32 %v69, %v1727
  %v1729 = vand.u32 %v1728, 4294901760
  %1730 = vmatpush2.msra.mxu0 %v1729
  %v1731 = vand.u32 %v18, 4294901760
  %1732 = vmatprep.mubr.f32.mxu0 %v1731
  %v1733 = vand.u32 %v17, 4294901760
  %1734 = vmatmul.mubr.f32.gmra.mxu0 %v1733
  %v1735 = vpop.f32.mrf.mxu0
  %v1736 = vadd.f32 %v1568, %v1735
  %v1737 = vpop.f32.mrf.mxu0
  %1738 = vdwg.mxu0
  %1739 = vmatprep.subr.mxu0 0.0
  %v1740 = vand.u32 %v68, 4294901760
  %1741 = vmatpush1.msra.mxu0 %v1740
  %1742 = vmatprep.subr.mxu0 0.0
  %v1743 = vand.u32 %v67, 4294901760
  %1744 = vmatpush1.msra.mxu0 %v1743
  %1745 = vmatprep.subr.mxu0 0.0
  %v1746 = vand.u32 %v66, 4294901760
  %1747 = vmatpush1.msra.mxu0 %v1746
  %1748 = vmatprep.subr.mxu0 0.0
  %v1749 = vand.u32 %v65, 4294901760
  %1750 = vmatpush1.msra.mxu0 %v1749
  %1751 = vmatprep.subr.mxu0 0.0
  %v1752 = vand.u32 %v64, 4294901760
  %1753 = vmatpush1.msra.mxu0 %v1752
  %1754 = vmatprep.subr.mxu0 0.0
  %v1755 = vand.u32 %v63, 4294901760
  %1756 = vmatpush1.msra.mxu0 %v1755
  %1757 = vmatprep.subr.mxu0 0.0
  %v1758 = vand.u32 %v62, 4294901760
  %1759 = vmatpush1.msra.mxu0 %v1758
  %1760 = vmatprep.subr.mxu0 0.0
  %v1761 = vand.u32 %v61, 4294901760
  %1762 = vmatpush1.msra.mxu0 %v1761
  %1763 = vmatprep.subr.mxu0 0.0
  %v1764 = vand.u32 %v60, 4294901760
  %1765 = vmatpush1.msra.mxu0 %v1764
  %1766 = vmatprep.subr.mxu0 0.0
  %v1767 = vand.u32 %v59, 4294901760
  %1768 = vmatpush1.msra.mxu0 %v1767
  %1769 = vmatprep.subr.mxu0 0.0
  %v1770 = vand.u32 %v58, 4294901760
  %1771 = vmatpush1.msra.mxu0 %v1770
  %1772 = vmatprep.subr.mxu0 0.0
  %v1773 = vand.u32 %v57, 4294901760
  %1774 = vmatpush1.msra.mxu0 %v1773
  %1775 = vmatprep.subr.mxu0 0.0
  %v1776 = vand.u32 %v56, 4294901760
  %1777 = vmatpush1.msra.mxu0 %v1776
  %1778 = vmatprep.subr.mxu0 0.0
  %v1779 = vand.u32 %v55, 4294901760
  %1780 = vmatpush1.msra.mxu0 %v1779
  %1781 = vmatprep.subr.mxu0 0.0
  %v1782 = vand.u32 %v54, 4294901760
  %1783 = vmatpush1.msra.mxu0 %v1782
  %1784 = vmatprep.subr.mxu0 0.0
  %v1785 = vand.u32 %v53, 4294901760
  %1786 = vmatpush1.msra.mxu0 %v1785
  %1787 = vmatprep.subr.mxu0 0.0
  %v1788 = vand.u32 %v84, 4294901760
  %1789 = vmatpush2.msra.mxu0 %v1788
  %1790 = vmatprep.subr.mxu0 0.0
  %v1791 = vand.u32 %v83, 4294901760
  %1792 = vmatpush2.msra.mxu0 %v1791
  %1793 = vmatprep.subr.mxu0 0.0
  %v1794 = vand.u32 %v82, 4294901760
  %1795 = vmatpush2.msra.mxu0 %v1794
  %1796 = vmatprep.subr.mxu0 0.0
  %v1797 = vand.u32 %v81, 4294901760
  %1798 = vmatpush2.msra.mxu0 %v1797
  %1799 = vmatprep.subr.mxu0 0.0
  %v1800 = vand.u32 %v80, 4294901760
  %1801 = vmatpush2.msra.mxu0 %v1800
  %1802 = vmatprep.subr.mxu0 0.0
  %v1803 = vand.u32 %v79, 4294901760
  %1804 = vmatpush2.msra.mxu0 %v1803
  %1805 = vmatprep.subr.mxu0 0.0
  %v1806 = vand.u32 %v78, 4294901760
  %1807 = vmatpush2.msra.mxu0 %v1806
  %1808 = vmatprep.subr.mxu0 0.0
  %v1809 = vand.u32 %v77, 4294901760
  %1810 = vmatpush2.msra.mxu0 %v1809
  %1811 = vmatprep.subr.mxu0 0.0
  %v1812 = vand.u32 %v76, 4294901760
  %1813 = vmatpush2.msra.mxu0 %v1812
  %1814 = vmatprep.subr.mxu0 0.0
  %v1815 = vand.u32 %v75, 4294901760
  %1816 = vmatpush2.msra.mxu0 %v1815
  %1817 = vmatprep.subr.mxu0 0.0
  %v1818 = vand.u32 %v74, 4294901760
  %1819 = vmatpush2.msra.mxu0 %v1818
  %1820 = vmatprep.subr.mxu0 0.0
  %v1821 = vand.u32 %v73, 4294901760
  %1822 = vmatpush2.msra.mxu0 %v1821
  %1823 = vmatprep.subr.mxu0 0.0
  %v1824 = vand.u32 %v72, 4294901760
  %1825 = vmatpush2.msra.mxu0 %v1824
  %1826 = vmatprep.subr.mxu0 0.0
  %v1827 = vand.u32 %v71, 4294901760
  %1828 = vmatpush2.msra.mxu0 %v1827
  %1829 = vmatprep.subr.mxu0 0.0
  %v1830 = vand.u32 %v70, 4294901760
  %1831 = vmatpush2.msra.mxu0 %v1830
  %1832 = vmatprep.subr.mxu0 0.0
  %v1833 = vand.u32 %v69, 4294901760
  %1834 = vmatpush2.msra.mxu0 %v1833
  %v1835 = vand.u32 %v18, 4294901760
  %1836 = vmatprep.mubr.f32.mxu0 %v1835
  %v1837 = vand.u32 %v17, 4294901760
  %1838 = vmatmul.mubr.f32.gmra.mxu0 %v1837
  %v1839 = vpop.f32.mrf.mxu0
  %v1840 = vadd.f32 %v1736, %v1839
  %v1841 = vpop.f32.mrf.mxu0
  %1842 = vdwg.mxu0
  %1843 = vmatprep.subr.mxu0 0.0
  %v1844 = vand.u32 %v100, 4294901760
  %1845 = vmatpush1.msra.mxu0 %v1844
  %1846 = vmatprep.subr.mxu0 0.0
  %v1847 = vand.u32 %v99, 4294901760
  %1848 = vmatpush1.msra.mxu0 %v1847
  %1849 = vmatprep.subr.mxu0 0.0
  %v1850 = vand.u32 %v98, 4294901760
  %1851 = vmatpush1.msra.mxu0 %v1850
  %1852 = vmatprep.subr.mxu0 0.0
  %v1853 = vand.u32 %v97, 4294901760
  %1854 = vmatpush1.msra.mxu0 %v1853
  %1855 = vmatprep.subr.mxu0 0.0
  %v1856 = vand.u32 %v96, 4294901760
  %1857 = vmatpush1.msra.mxu0 %v1856
  %1858 = vmatprep.subr.mxu0 0.0
  %v1859 = vand.u32 %v95, 4294901760
  %1860 = vmatpush1.msra.mxu0 %v1859
  %1861 = vmatprep.subr.mxu0 0.0
  %v1862 = vand.u32 %v94, 4294901760
  %1863 = vmatpush1.msra.mxu0 %v1862
  %1864 = vmatprep.subr.mxu0 0.0
  %v1865 = vand.u32 %v93, 4294901760
  %1866 = vmatpush1.msra.mxu0 %v1865
  %1867 = vmatprep.subr.mxu0 0.0
  %v1868 = vand.u32 %v92, 4294901760
  %1869 = vmatpush1.msra.mxu0 %v1868
  %1870 = vmatprep.subr.mxu0 0.0
  %v1871 = vand.u32 %v91, 4294901760
  %1872 = vmatpush1.msra.mxu0 %v1871
  %1873 = vmatprep.subr.mxu0 0.0
  %v1874 = vand.u32 %v90, 4294901760
  %1875 = vmatpush1.msra.mxu0 %v1874
  %1876 = vmatprep.subr.mxu0 0.0
  %v1877 = vand.u32 %v89, 4294901760
  %1878 = vmatpush1.msra.mxu0 %v1877
  %1879 = vmatprep.subr.mxu0 0.0
  %v1880 = vand.u32 %v88, 4294901760
  %1881 = vmatpush1.msra.mxu0 %v1880
  %1882 = vmatprep.subr.mxu0 0.0
  %v1883 = vand.u32 %v87, 4294901760
  %1884 = vmatpush1.msra.mxu0 %v1883
  %1885 = vmatprep.subr.mxu0 0.0
  %v1886 = vand.u32 %v86, 4294901760
  %1887 = vmatpush1.msra.mxu0 %v1886
  %1888 = vmatprep.subr.mxu0 0.0
  %v1889 = vand.u32 %v85, 4294901760
  %1890 = vmatpush1.msra.mxu0 %v1889
  %1891 = vmatprep.subr.mxu0 0.0
  %v1892 = vand.u32 %v116, 4294901760
  %1893 = vmatpush2.msra.mxu0 %v1892
  %1894 = vmatprep.subr.mxu0 0.0
  %v1895 = vand.u32 %v115, 4294901760
  %1896 = vmatpush2.msra.mxu0 %v1895
  %1897 = vmatprep.subr.mxu0 0.0
  %v1898 = vand.u32 %v114, 4294901760
  %1899 = vmatpush2.msra.mxu0 %v1898
  %1900 = vmatprep.subr.mxu0 0.0
  %v1901 = vand.u32 %v113, 4294901760
  %1902 = vmatpush2.msra.mxu0 %v1901
  %1903 = vmatprep.subr.mxu0 0.0
  %v1904 = vand.u32 %v112, 4294901760
  %1905 = vmatpush2.msra.mxu0 %v1904
  %1906 = vmatprep.subr.mxu0 0.0
  %v1907 = vand.u32 %v111, 4294901760
  %1908 = vmatpush2.msra.mxu0 %v1907
  %1909 = vmatprep.subr.mxu0 0.0
  %v1910 = vand.u32 %v110, 4294901760
  %1911 = vmatpush2.msra.mxu0 %v1910
  %1912 = vmatprep.subr.mxu0 0.0
  %v1913 = vand.u32 %v109, 4294901760
  %1914 = vmatpush2.msra.mxu0 %v1913
  %1915 = vmatprep.subr.mxu0 0.0
  %v1916 = vand.u32 %v108, 4294901760
  %1917 = vmatpush2.msra.mxu0 %v1916
  %1918 = vmatprep.subr.mxu0 0.0
  %v1919 = vand.u32 %v107, 4294901760
  %1920 = vmatpush2.msra.mxu0 %v1919
  %1921 = vmatprep.subr.mxu0 0.0
  %v1922 = vand.u32 %v106, 4294901760
  %1923 = vmatpush2.msra.mxu0 %v1922
  %1924 = vmatprep.subr.mxu0 0.0
  %v1925 = vand.u32 %v105, 4294901760
  %1926 = vmatpush2.msra.mxu0 %v1925
  %1927 = vmatprep.subr.mxu0 0.0
  %v1928 = vand.u32 %v104, 4294901760
  %1929 = vmatpush2.msra.mxu0 %v1928
  %1930 = vmatprep.subr.mxu0 0.0
  %v1931 = vand.u32 %v103, 4294901760
  %1932 = vmatpush2.msra.mxu0 %v1931
  %1933 = vmatprep.subr.mxu0 0.0
  %v1934 = vand.u32 %v102, 4294901760
  %1935 = vmatpush2.msra.mxu0 %v1934
  %1936 = vmatprep.subr.mxu0 0.0
  %v1937 = vand.u32 %v101, 4294901760
  %1938 = vmatpush2.msra.mxu0 %v1937
  %v1939 = vand.u32 %v20, 4294901760
  %v1940 = vsub.f32 %v20, %v1939
  %v1941 = vand.u32 %v1940, 4294901760
  %v1942 = vsub.f32 %v1940, %v1941
  %v1943 = vand.u32 %v1942, 4294901760
  %1944 = vmatprep.mubr.f32.mxu0 %v1943
  %v1945 = vand.u32 %v19, 4294901760
  %v1946 = vsub.f32 %v19, %v1945
  %v1947 = vand.u32 %v1946, 4294901760
  %v1948 = vsub.f32 %v1946, %v1947
  %v1949 = vand.u32 %v1948, 4294901760
  %1950 = vmatmul.mubr.f32.gmra.mxu0 %v1949
  %v1951 = vpop.f32.mrf.mxu0
  %v1952 = vadd.f32 %v1840, %v1951
  %v1953 = vpop.f32.mrf.mxu0
  %1954 = vdwg.mxu0
  %1955 = vmatprep.subr.mxu0 0.0
  %v1956 = vand.u32 %v100, 4294901760
  %v1957 = vsub.f32 %v100, %v1956
  %v1958 = vand.u32 %v1957, 4294901760
  %v1959 = vsub.f32 %v1957, %v1958
  %v1960 = vand.u32 %v1959, 4294901760
  %1961 = vmatpush1.msra.mxu0 %v1960
  %1962 = vmatprep.subr.mxu0 0.0
  %v1963 = vand.u32 %v99, 4294901760
  %v1964 = vsub.f32 %v99, %v1963
  %v1965 = vand.u32 %v1964, 4294901760
  %v1966 = vsub.f32 %v1964, %v1965
  %v1967 = vand.u32 %v1966, 4294901760
  %1968 = vmatpush1.msra.mxu0 %v1967
  %1969 = vmatprep.subr.mxu0 0.0
  %v1970 = vand.u32 %v98, 4294901760
  %v1971 = vsub.f32 %v98, %v1970
  %v1972 = vand.u32 %v1971, 4294901760
  %v1973 = vsub.f32 %v1971, %v1972
  %v1974 = vand.u32 %v1973, 4294901760
  %1975 = vmatpush1.msra.mxu0 %v1974
  %1976 = vmatprep.subr.mxu0 0.0
  %v1977 = vand.u32 %v97, 4294901760
  %v1978 = vsub.f32 %v97, %v1977
  %v1979 = vand.u32 %v1978, 4294901760
  %v1980 = vsub.f32 %v1978, %v1979
  %v1981 = vand.u32 %v1980, 4294901760
  %1982 = vmatpush1.msra.mxu0 %v1981
  %1983 = vmatprep.subr.mxu0 0.0
  %v1984 = vand.u32 %v96, 4294901760
  %v1985 = vsub.f32 %v96, %v1984
  %v1986 = vand.u32 %v1985, 4294901760
  %v1987 = vsub.f32 %v1985, %v1986
  %v1988 = vand.u32 %v1987, 4294901760
  %1989 = vmatpush1.msra.mxu0 %v1988
  %1990 = vmatprep.subr.mxu0 0.0
  %v1991 = vand.u32 %v95, 4294901760
  %v1992 = vsub.f32 %v95, %v1991
  %v1993 = vand.u32 %v1992, 4294901760
  %v1994 = vsub.f32 %v1992, %v1993
  %v1995 = vand.u32 %v1994, 4294901760
  %1996 = vmatpush1.msra.mxu0 %v1995
  %1997 = vmatprep.subr.mxu0 0.0
  %v1998 = vand.u32 %v94, 4294901760
  %v1999 = vsub.f32 %v94, %v1998
  %v2000 = vand.u32 %v1999, 4294901760
  %v2001 = vsub.f32 %v1999, %v2000
  %v2002 = vand.u32 %v2001, 4294901760
  %2003 = vmatpush1.msra.mxu0 %v2002
  %2004 = vmatprep.subr.mxu0 0.0
  %v2005 = vand.u32 %v93, 4294901760
  %v2006 = vsub.f32 %v93, %v2005
  %v2007 = vand.u32 %v2006, 4294901760
  %v2008 = vsub.f32 %v2006, %v2007
  %v2009 = vand.u32 %v2008, 4294901760
  %2010 = vmatpush1.msra.mxu0 %v2009
  %2011 = vmatprep.subr.mxu0 0.0
  %v2012 = vand.u32 %v92, 4294901760
  %v2013 = vsub.f32 %v92, %v2012
  %v2014 = vand.u32 %v2013, 4294901760
  %v2015 = vsub.f32 %v2013, %v2014
  %v2016 = vand.u32 %v2015, 4294901760
  %2017 = vmatpush1.msra.mxu0 %v2016
  %2018 = vmatprep.subr.mxu0 0.0
  %v2019 = vand.u32 %v91, 4294901760
  %v2020 = vsub.f32 %v91, %v2019
  %v2021 = vand.u32 %v2020, 4294901760
  %v2022 = vsub.f32 %v2020, %v2021
  %v2023 = vand.u32 %v2022, 4294901760
  %2024 = vmatpush1.msra.mxu0 %v2023
  %2025 = vmatprep.subr.mxu0 0.0
  %v2026 = vand.u32 %v90, 4294901760
  %v2027 = vsub.f32 %v90, %v2026
  %v2028 = vand.u32 %v2027, 4294901760
  %v2029 = vsub.f32 %v2027, %v2028
  %v2030 = vand.u32 %v2029, 4294901760
  %2031 = vmatpush1.msra.mxu0 %v2030
  %2032 = vmatprep.subr.mxu0 0.0
  %v2033 = vand.u32 %v89, 4294901760
  %v2034 = vsub.f32 %v89, %v2033
  %v2035 = vand.u32 %v2034, 4294901760
  %v2036 = vsub.f32 %v2034, %v2035
  %v2037 = vand.u32 %v2036, 4294901760
  %2038 = vmatpush1.msra.mxu0 %v2037
  %2039 = vmatprep.subr.mxu0 0.0
  %v2040 = vand.u32 %v88, 4294901760
  %v2041 = vsub.f32 %v88, %v2040
  %v2042 = vand.u32 %v2041, 4294901760
  %v2043 = vsub.f32 %v2041, %v2042
  %v2044 = vand.u32 %v2043, 4294901760
  %2045 = vmatpush1.msra.mxu0 %v2044
  %2046 = vmatprep.subr.mxu0 0.0
  %v2047 = vand.u32 %v87, 4294901760
  %v2048 = vsub.f32 %v87, %v2047
  %v2049 = vand.u32 %v2048, 4294901760
  %v2050 = vsub.f32 %v2048, %v2049
  %v2051 = vand.u32 %v2050, 4294901760
  %2052 = vmatpush1.msra.mxu0 %v2051
  %2053 = vmatprep.subr.mxu0 0.0
  %v2054 = vand.u32 %v86, 4294901760
  %v2055 = vsub.f32 %v86, %v2054
  %v2056 = vand.u32 %v2055, 4294901760
  %v2057 = vsub.f32 %v2055, %v2056
  %v2058 = vand.u32 %v2057, 4294901760
  %2059 = vmatpush1.msra.mxu0 %v2058
  %2060 = vmatprep.subr.mxu0 0.0
  %v2061 = vand.u32 %v85, 4294901760
  %v2062 = vsub.f32 %v85, %v2061
  %v2063 = vand.u32 %v2062, 4294901760
  %v2064 = vsub.f32 %v2062, %v2063
  %v2065 = vand.u32 %v2064, 4294901760
  %2066 = vmatpush1.msra.mxu0 %v2065
  %2067 = vmatprep.subr.mxu0 0.0
  %v2068 = vand.u32 %v116, 4294901760
  %v2069 = vsub.f32 %v116, %v2068
  %v2070 = vand.u32 %v2069, 4294901760
  %v2071 = vsub.f32 %v2069, %v2070
  %v2072 = vand.u32 %v2071, 4294901760
  %2073 = vmatpush2.msra.mxu0 %v2072
  %2074 = vmatprep.subr.mxu0 0.0
  %v2075 = vand.u32 %v115, 4294901760
  %v2076 = vsub.f32 %v115, %v2075
  %v2077 = vand.u32 %v2076, 4294901760
  %v2078 = vsub.f32 %v2076, %v2077
  %v2079 = vand.u32 %v2078, 4294901760
  %2080 = vmatpush2.msra.mxu0 %v2079
  %2081 = vmatprep.subr.mxu0 0.0
  %v2082 = vand.u32 %v114, 4294901760
  %v2083 = vsub.f32 %v114, %v2082
  %v2084 = vand.u32 %v2083, 4294901760
  %v2085 = vsub.f32 %v2083, %v2084
  %v2086 = vand.u32 %v2085, 4294901760
  %2087 = vmatpush2.msra.mxu0 %v2086
  %2088 = vmatprep.subr.mxu0 0.0
  %v2089 = vand.u32 %v113, 4294901760
  %v2090 = vsub.f32 %v113, %v2089
  %v2091 = vand.u32 %v2090, 4294901760
  %v2092 = vsub.f32 %v2090, %v2091
  %v2093 = vand.u32 %v2092, 4294901760
  %2094 = vmatpush2.msra.mxu0 %v2093
  %2095 = vmatprep.subr.mxu0 0.0
  %v2096 = vand.u32 %v112, 4294901760
  %v2097 = vsub.f32 %v112, %v2096
  %v2098 = vand.u32 %v2097, 4294901760
  %v2099 = vsub.f32 %v2097, %v2098
  %v2100 = vand.u32 %v2099, 4294901760
  %2101 = vmatpush2.msra.mxu0 %v2100
  %2102 = vmatprep.subr.mxu0 0.0
  %v2103 = vand.u32 %v111, 4294901760
  %v2104 = vsub.f32 %v111, %v2103
  %v2105 = vand.u32 %v2104, 4294901760
  %v2106 = vsub.f32 %v2104, %v2105
  %v2107 = vand.u32 %v2106, 4294901760
  %2108 = vmatpush2.msra.mxu0 %v2107
  %2109 = vmatprep.subr.mxu0 0.0
  %v2110 = vand.u32 %v110, 4294901760
  %v2111 = vsub.f32 %v110, %v2110
  %v2112 = vand.u32 %v2111, 4294901760
  %v2113 = vsub.f32 %v2111, %v2112
  %v2114 = vand.u32 %v2113, 4294901760
  %2115 = vmatpush2.msra.mxu0 %v2114
  %2116 = vmatprep.subr.mxu0 0.0
  %v2117 = vand.u32 %v109, 4294901760
  %v2118 = vsub.f32 %v109, %v2117
  %v2119 = vand.u32 %v2118, 4294901760
  %v2120 = vsub.f32 %v2118, %v2119
  %v2121 = vand.u32 %v2120, 4294901760
  %2122 = vmatpush2.msra.mxu0 %v2121
  %2123 = vmatprep.subr.mxu0 0.0
  %v2124 = vand.u32 %v108, 4294901760
  %v2125 = vsub.f32 %v108, %v2124
  %v2126 = vand.u32 %v2125, 4294901760
  %v2127 = vsub.f32 %v2125, %v2126
  %v2128 = vand.u32 %v2127, 4294901760
  %2129 = vmatpush2.msra.mxu0 %v2128
  %2130 = vmatprep.subr.mxu0 0.0
  %v2131 = vand.u32 %v107, 4294901760
  %v2132 = vsub.f32 %v107, %v2131
  %v2133 = vand.u32 %v2132, 4294901760
  %v2134 = vsub.f32 %v2132, %v2133
  %v2135 = vand.u32 %v2134, 4294901760
  %2136 = vmatpush2.msra.mxu0 %v2135
  %2137 = vmatprep.subr.mxu0 0.0
  %v2138 = vand.u32 %v106, 4294901760
  %v2139 = vsub.f32 %v106, %v2138
  %v2140 = vand.u32 %v2139, 4294901760
  %v2141 = vsub.f32 %v2139, %v2140
  %v2142 = vand.u32 %v2141, 4294901760
  %2143 = vmatpush2.msra.mxu0 %v2142
  %2144 = vmatprep.subr.mxu0 0.0
  %v2145 = vand.u32 %v105, 4294901760
  %v2146 = vsub.f32 %v105, %v2145
  %v2147 = vand.u32 %v2146, 4294901760
  %v2148 = vsub.f32 %v2146, %v2147
  %v2149 = vand.u32 %v2148, 4294901760
  %2150 = vmatpush2.msra.mxu0 %v2149
  %2151 = vmatprep.subr.mxu0 0.0
  %v2152 = vand.u32 %v104, 4294901760
  %v2153 = vsub.f32 %v104, %v2152
  %v2154 = vand.u32 %v2153, 4294901760
  %v2155 = vsub.f32 %v2153, %v2154
  %v2156 = vand.u32 %v2155, 4294901760
  %2157 = vmatpush2.msra.mxu0 %v2156
  %2158 = vmatprep.subr.mxu0 0.0
  %v2159 = vand.u32 %v103, 4294901760
  %v2160 = vsub.f32 %v103, %v2159
  %v2161 = vand.u32 %v2160, 4294901760
  %v2162 = vsub.f32 %v2160, %v2161
  %v2163 = vand.u32 %v2162, 4294901760
  %2164 = vmatpush2.msra.mxu0 %v2163
  %2165 = vmatprep.subr.mxu0 0.0
  %v2166 = vand.u32 %v102, 4294901760
  %v2167 = vsub.f32 %v102, %v2166
  %v2168 = vand.u32 %v2167, 4294901760
  %v2169 = vsub.f32 %v2167, %v2168
  %v2170 = vand.u32 %v2169, 4294901760
  %2171 = vmatpush2.msra.mxu0 %v2170
  %2172 = vmatprep.subr.mxu0 0.0
  %v2173 = vand.u32 %v101, 4294901760
  %v2174 = vsub.f32 %v101, %v2173
  %v2175 = vand.u32 %v2174, 4294901760
  %v2176 = vsub.f32 %v2174, %v2175
  %v2177 = vand.u32 %v2176, 4294901760
  %2178 = vmatpush2.msra.mxu0 %v2177
  %v2179 = vand.u32 %v20, 4294901760
  %2180 = vmatprep.mubr.f32.mxu0 %v2179
  %v2181 = vand.u32 %v19, 4294901760
  %2182 = vmatmul.mubr.f32.gmra.mxu0 %v2181
  %v2183 = vpop.f32.mrf.mxu0
  %v2184 = vadd.f32 %v1952, %v2183
  %v2185 = vpop.f32.mrf.mxu0
  %2186 = vdwg.mxu0
  %2187 = vmatprep.subr.mxu0 0.0
  %v2188 = vand.u32 %v100, 4294901760
  %v2189 = vsub.f32 %v100, %v2188
  %2190 = vmatpush1.msra.mxu0 %v2189
  %2191 = vmatprep.subr.mxu0 0.0
  %v2192 = vand.u32 %v99, 4294901760
  %v2193 = vsub.f32 %v99, %v2192
  %2194 = vmatpush1.msra.mxu0 %v2193
  %2195 = vmatprep.subr.mxu0 0.0
  %v2196 = vand.u32 %v98, 4294901760
  %v2197 = vsub.f32 %v98, %v2196
  %2198 = vmatpush1.msra.mxu0 %v2197
  %2199 = vmatprep.subr.mxu0 0.0
  %v2200 = vand.u32 %v97, 4294901760
  %v2201 = vsub.f32 %v97, %v2200
  %2202 = vmatpush1.msra.mxu0 %v2201
  %2203 = vmatprep.subr.mxu0 0.0
  %v2204 = vand.u32 %v96, 4294901760
  %v2205 = vsub.f32 %v96, %v2204
  %2206 = vmatpush1.msra.mxu0 %v2205
  %2207 = vmatprep.subr.mxu0 0.0
  %v2208 = vand.u32 %v95, 4294901760
  %v2209 = vsub.f32 %v95, %v2208
  %2210 = vmatpush1.msra.mxu0 %v2209
  %2211 = vmatprep.subr.mxu0 0.0
  %v2212 = vand.u32 %v94, 4294901760
  %v2213 = vsub.f32 %v94, %v2212
  %2214 = vmatpush1.msra.mxu0 %v2213
  %2215 = vmatprep.subr.mxu0 0.0
  %v2216 = vand.u32 %v93, 4294901760
  %v2217 = vsub.f32 %v93, %v2216
  %2218 = vmatpush1.msra.mxu0 %v2217
  %2219 = vmatprep.subr.mxu0 0.0
  %v2220 = vand.u32 %v92, 4294901760
  %v2221 = vsub.f32 %v92, %v2220
  %2222 = vmatpush1.msra.mxu0 %v2221
  %2223 = vmatprep.subr.mxu0 0.0
  %v2224 = vand.u32 %v91, 4294901760
  %v2225 = vsub.f32 %v91, %v2224
  %2226 = vmatpush1.msra.mxu0 %v2225
  %2227 = vmatprep.subr.mxu0 0.0
  %v2228 = vand.u32 %v90, 4294901760
  %v2229 = vsub.f32 %v90, %v2228
  %2230 = vmatpush1.msra.mxu0 %v2229
  %2231 = vmatprep.subr.mxu0 0.0
  %v2232 = vand.u32 %v89, 4294901760
  %v2233 = vsub.f32 %v89, %v2232
  %2234 = vmatpush1.msra.mxu0 %v2233
  %2235 = vmatprep.subr.mxu0 0.0
  %v2236 = vand.u32 %v88, 4294901760
  %v2237 = vsub.f32 %v88, %v2236
  %2238 = vmatpush1.msra.mxu0 %v2237
  %2239 = vmatprep.subr.mxu0 0.0
  %v2240 = vand.u32 %v87, 4294901760
  %v2241 = vsub.f32 %v87, %v2240
  %2242 = vmatpush1.msra.mxu0 %v2241
  %2243 = vmatprep.subr.mxu0 0.0
  %v2244 = vand.u32 %v86, 4294901760
  %v2245 = vsub.f32 %v86, %v2244
  %2246 = vmatpush1.msra.mxu0 %v2245
  %2247 = vmatprep.subr.mxu0 0.0
  %v2248 = vand.u32 %v85, 4294901760
  %v2249 = vsub.f32 %v85, %v2248
  %2250 = vmatpush1.msra.mxu0 %v2249
  %2251 = vmatprep.subr.mxu0 0.0
  %v2252 = vand.u32 %v116, 4294901760
  %v2253 = vsub.f32 %v116, %v2252
  %2254 = vmatpush2.msra.mxu0 %v2253
  %2255 = vmatprep.subr.mxu0 0.0
  %v2256 = vand.u32 %v115, 4294901760
  %v2257 = vsub.f32 %v115, %v2256
  %2258 = vmatpush2.msra.mxu0 %v2257
  %2259 = vmatprep.subr.mxu0 0.0
  %v2260 = vand.u32 %v114, 4294901760
  %v2261 = vsub.f32 %v114, %v2260
  %2262 = vmatpush2.msra.mxu0 %v2261
  %2263 = vmatprep.subr.mxu0 0.0
  %v2264 = vand.u32 %v113, 4294901760
  %v2265 = vsub.f32 %v113, %v2264
  %2266 = vmatpush2.msra.mxu0 %v2265
  %2267 = vmatprep.subr.mxu0 0.0
  %v2268 = vand.u32 %v112, 4294901760
  %v2269 = vsub.f32 %v112, %v2268
  %2270 = vmatpush2.msra.mxu0 %v2269
  %2271 = vmatprep.subr.mxu0 0.0
  %v2272 = vand.u32 %v111, 4294901760
  %v2273 = vsub.f32 %v111, %v2272
  %2274 = vmatpush2.msra.mxu0 %v2273
  %2275 = vmatprep.subr.mxu0 0.0
  %v2276 = vand.u32 %v110, 4294901760
  %v2277 = vsub.f32 %v110, %v2276
  %2278 = vmatpush2.msra.mxu0 %v2277
  %2279 = vmatprep.subr.mxu0 0.0
  %v2280 = vand.u32 %v109, 4294901760
  %v2281 = vsub.f32 %v109, %v2280
  %2282 = vmatpush2.msra.mxu0 %v2281
  %2283 = vmatprep.subr.mxu0 0.0
  %v2284 = vand.u32 %v108, 4294901760
  %v2285 = vsub.f32 %v108, %v2284
  %2286 = vmatpush2.msra.mxu0 %v2285
  %2287 = vmatprep.subr.mxu0 0.0
  %v2288 = vand.u32 %v107, 4294901760
  %v2289 = vsub.f32 %v107, %v2288
  %2290 = vmatpush2.msra.mxu0 %v2289
  %2291 = vmatprep.subr.mxu0 0.0
  %v2292 = vand.u32 %v106, 4294901760
  %v2293 = vsub.f32 %v106, %v2292
  %2294 = vmatpush2.msra.mxu0 %v2293
  %2295 = vmatprep.subr.mxu0 0.0
  %v2296 = vand.u32 %v105, 4294901760
  %v2297 = vsub.f32 %v105, %v2296
  %2298 = vmatpush2.msra.mxu0 %v2297
  %2299 = vmatprep.subr.mxu0 0.0
  %v2300 = vand.u32 %v104, 4294901760
  %v2301 = vsub.f32 %v104, %v2300
  %2302 = vmatpush2.msra.mxu0 %v2301
  %2303 = vmatprep.subr.mxu0 0.0
  %v2304 = vand.u32 %v103, 4294901760
  %v2305 = vsub.f32 %v103, %v2304
  %2306 = vmatpush2.msra.mxu0 %v2305
  %2307 = vmatprep.subr.mxu0 0.0
  %v2308 = vand.u32 %v102, 4294901760
  %v2309 = vsub.f32 %v102, %v2308
  %2310 = vmatpush2.msra.mxu0 %v2309
  %2311 = vmatprep.subr.mxu0 0.0
  %v2312 = vand.u32 %v101, 4294901760
  %v2313 = vsub.f32 %v101, %v2312
  %2314 = vmatpush2.msra.mxu0 %v2313
  %v2315 = vand.u32 %v20, 4294901760
  %v2316 = vsub.f32 %v20, %v2315
  %2317 = vmatprep.mubr.f32.mxu0 %v2316
  %v2318 = vand.u32 %v19, 4294901760
  %v2319 = vsub.f32 %v19, %v2318
  %2320 = vmatmul.mubr.f32.gmra.mxu0 %v2319
  %v2321 = vpop.f32.mrf.mxu0
  %v2322 = vadd.f32 %v2184, %v2321
  %v2323 = vpop.f32.mrf.mxu0
  %2324 = vdwg.mxu0
  %2325 = vmatprep.subr.mxu0 0.0
  %v2326 = vand.u32 %v100, 4294901760
  %2327 = vmatpush1.msra.mxu0 %v2326
  %2328 = vmatprep.subr.mxu0 0.0
  %v2329 = vand.u32 %v99, 4294901760
  %2330 = vmatpush1.msra.mxu0 %v2329
  %2331 = vmatprep.subr.mxu0 0.0
  %v2332 = vand.u32 %v98, 4294901760
  %2333 = vmatpush1.msra.mxu0 %v2332
  %2334 = vmatprep.subr.mxu0 0.0
  %v2335 = vand.u32 %v97, 4294901760
  %2336 = vmatpush1.msra.mxu0 %v2335
  %2337 = vmatprep.subr.mxu0 0.0
  %v2338 = vand.u32 %v96, 4294901760
  %2339 = vmatpush1.msra.mxu0 %v2338
  %2340 = vmatprep.subr.mxu0 0.0
  %v2341 = vand.u32 %v95, 4294901760
  %2342 = vmatpush1.msra.mxu0 %v2341
  %2343 = vmatprep.subr.mxu0 0.0
  %v2344 = vand.u32 %v94, 4294901760
  %2345 = vmatpush1.msra.mxu0 %v2344
  %2346 = vmatprep.subr.mxu0 0.0
  %v2347 = vand.u32 %v93, 4294901760
  %2348 = vmatpush1.msra.mxu0 %v2347
  %2349 = vmatprep.subr.mxu0 0.0
  %v2350 = vand.u32 %v92, 4294901760
  %2351 = vmatpush1.msra.mxu0 %v2350
  %2352 = vmatprep.subr.mxu0 0.0
  %v2353 = vand.u32 %v91, 4294901760
  %2354 = vmatpush1.msra.mxu0 %v2353
  %2355 = vmatprep.subr.mxu0 0.0
  %v2356 = vand.u32 %v90, 4294901760
  %2357 = vmatpush1.msra.mxu0 %v2356
  %2358 = vmatprep.subr.mxu0 0.0
  %v2359 = vand.u32 %v89, 4294901760
  %2360 = vmatpush1.msra.mxu0 %v2359
  %2361 = vmatprep.subr.mxu0 0.0
  %v2362 = vand.u32 %v88, 4294901760
  %2363 = vmatpush1.msra.mxu0 %v2362
  %2364 = vmatprep.subr.mxu0 0.0
  %v2365 = vand.u32 %v87, 4294901760
  %2366 = vmatpush1.msra.mxu0 %v2365
  %2367 = vmatprep.subr.mxu0 0.0
  %v2368 = vand.u32 %v86, 4294901760
  %2369 = vmatpush1.msra.mxu0 %v2368
  %2370 = vmatprep.subr.mxu0 0.0
  %v2371 = vand.u32 %v85, 4294901760
  %2372 = vmatpush1.msra.mxu0 %v2371
  %2373 = vmatprep.subr.mxu0 0.0
  %v2374 = vand.u32 %v116, 4294901760
  %2375 = vmatpush2.msra.mxu0 %v2374
  %2376 = vmatprep.subr.mxu0 0.0
  %v2377 = vand.u32 %v115, 4294901760
  %2378 = vmatpush2.msra.mxu0 %v2377
  %2379 = vmatprep.subr.mxu0 0.0
  %v2380 = vand.u32 %v114, 4294901760
  %2381 = vmatpush2.msra.mxu0 %v2380
  %2382 = vmatprep.subr.mxu0 0.0
  %v2383 = vand.u32 %v113, 4294901760
  %2384 = vmatpush2.msra.mxu0 %v2383
  %2385 = vmatprep.subr.mxu0 0.0
  %v2386 = vand.u32 %v112, 4294901760
  %2387 = vmatpush2.msra.mxu0 %v2386
  %2388 = vmatprep.subr.mxu0 0.0
  %v2389 = vand.u32 %v111, 4294901760
  %2390 = vmatpush2.msra.mxu0 %v2389
  %2391 = vmatprep.subr.mxu0 0.0
  %v2392 = vand.u32 %v110, 4294901760
  %2393 = vmatpush2.msra.mxu0 %v2392
  %2394 = vmatprep.subr.mxu0 0.0
  %v2395 = vand.u32 %v109, 4294901760
  %2396 = vmatpush2.msra.mxu0 %v2395
  %2397 = vmatprep.subr.mxu0 0.0
  %v2398 = vand.u32 %v108, 4294901760
  %2399 = vmatpush2.msra.mxu0 %v2398
  %2400 = vmatprep.subr.mxu0 0.0
  %v2401 = vand.u32 %v107, 4294901760
  %2402 = vmatpush2.msra.mxu0 %v2401
  %2403 = vmatprep.subr.mxu0 0.0
  %v2404 = vand.u32 %v106, 4294901760
  %2405 = vmatpush2.msra.mxu0 %v2404
  %2406 = vmatprep.subr.mxu0 0.0
  %v2407 = vand.u32 %v105, 4294901760
  %2408 = vmatpush2.msra.mxu0 %v2407
  %2409 = vmatprep.subr.mxu0 0.0
  %v2410 = vand.u32 %v104, 4294901760
  %2411 = vmatpush2.msra.mxu0 %v2410
  %2412 = vmatprep.subr.mxu0 0.0
  %v2413 = vand.u32 %v103, 4294901760
  %2414 = vmatpush2.msra.mxu0 %v2413
  %2415 = vmatprep.subr.mxu0 0.0
  %v2416 = vand.u32 %v102, 4294901760
  %2417 = vmatpush2.msra.mxu0 %v2416
  %2418 = vmatprep.subr.mxu0 0.0
  %v2419 = vand.u32 %v101, 4294901760
  %2420 = vmatpush2.msra.mxu0 %v2419
  %v2421 = vand.u32 %v20, 4294901760
  %v2422 = vsub.f32 %v20, %v2421
  %v2423 = vand.u32 %v2422, 4294901760
  %2424 = vmatprep.mubr.f32.mxu0 %v2423
  %v2425 = vand.u32 %v19, 4294901760
  %v2426 = vsub.f32 %v19, %v2425
  %v2427 = vand.u32 %v2426, 4294901760
  %2428 = vmatmul.mubr.f32.gmra.mxu0 %v2427
  %v2429 = vpop.f32.mrf.mxu0
  %v2430 = vadd.f32 %v2322, %v2429
  %v2431 = vpop.f32.mrf.mxu0
  %2432 = vdwg.mxu0
  %2433 = vmatprep.subr.mxu0 0.0
  %v2434 = vand.u32 %v100, 4294901760
  %v2435 = vsub.f32 %v100, %v2434
  %v2436 = vand.u32 %v2435, 4294901760
  %2437 = vmatpush1.msra.mxu0 %v2436
  %2438 = vmatprep.subr.mxu0 0.0
  %v2439 = vand.u32 %v99, 4294901760
  %v2440 = vsub.f32 %v99, %v2439
  %v2441 = vand.u32 %v2440, 4294901760
  %2442 = vmatpush1.msra.mxu0 %v2441
  %2443 = vmatprep.subr.mxu0 0.0
  %v2444 = vand.u32 %v98, 4294901760
  %v2445 = vsub.f32 %v98, %v2444
  %v2446 = vand.u32 %v2445, 4294901760
  %2447 = vmatpush1.msra.mxu0 %v2446
  %2448 = vmatprep.subr.mxu0 0.0
  %v2449 = vand.u32 %v97, 4294901760
  %v2450 = vsub.f32 %v97, %v2449
  %v2451 = vand.u32 %v2450, 4294901760
  %2452 = vmatpush1.msra.mxu0 %v2451
  %2453 = vmatprep.subr.mxu0 0.0
  %v2454 = vand.u32 %v96, 4294901760
  %v2455 = vsub.f32 %v96, %v2454
  %v2456 = vand.u32 %v2455, 4294901760
  %2457 = vmatpush1.msra.mxu0 %v2456
  %2458 = vmatprep.subr.mxu0 0.0
  %v2459 = vand.u32 %v95, 4294901760
  %v2460 = vsub.f32 %v95, %v2459
  %v2461 = vand.u32 %v2460, 4294901760
  %2462 = vmatpush1.msra.mxu0 %v2461
  %2463 = vmatprep.subr.mxu0 0.0
  %v2464 = vand.u32 %v94, 4294901760
  %v2465 = vsub.f32 %v94, %v2464
  %v2466 = vand.u32 %v2465, 4294901760
  %2467 = vmatpush1.msra.mxu0 %v2466
  %2468 = vmatprep.subr.mxu0 0.0
  %v2469 = vand.u32 %v93, 4294901760
  %v2470 = vsub.f32 %v93, %v2469
  %v2471 = vand.u32 %v2470, 4294901760
  %2472 = vmatpush1.msra.mxu0 %v2471
  %2473 = vmatprep.subr.mxu0 0.0
  %v2474 = vand.u32 %v92, 4294901760
  %v2475 = vsub.f32 %v92, %v2474
  %v2476 = vand.u32 %v2475, 4294901760
  %2477 = vmatpush1.msra.mxu0 %v2476
  %2478 = vmatprep.subr.mxu0 0.0
  %v2479 = vand.u32 %v91, 4294901760
  %v2480 = vsub.f32 %v91, %v2479
  %v2481 = vand.u32 %v2480, 4294901760
  %2482 = vmatpush1.msra.mxu0 %v2481
  %2483 = vmatprep.subr.mxu0 0.0
  %v2484 = vand.u32 %v90, 4294901760
  %v2485 = vsub.f32 %v90, %v2484
  %v2486 = vand.u32 %v2485, 4294901760
  %2487 = vmatpush1.msra.mxu0 %v2486
  %2488 = vmatprep.subr.mxu0 0.0
  %v2489 = vand.u32 %v89, 4294901760
  %v2490 = vsub.f32 %v89, %v2489
  %v2491 = vand.u32 %v2490, 4294901760
  %2492 = vmatpush1.msra.mxu0 %v2491
  %2493 = vmatprep.subr.mxu0 0.0
  %v2494 = vand.u32 %v88, 4294901760
  %v2495 = vsub.f32 %v88, %v2494
  %v2496 = vand.u32 %v2495, 4294901760
  %2497 = vmatpush1.msra.mxu0 %v2496
  %2498 = vmatprep.subr.mxu0 0.0
  %v2499 = vand.u32 %v87, 4294901760
  %v2500 = vsub.f32 %v87, %v2499
  %v2501 = vand.u32 %v2500, 4294901760
  %2502 = vmatpush1.msra.mxu0 %v2501
  %2503 = vmatprep.subr.mxu0 0.0
  %v2504 = vand.u32 %v86, 4294901760
  %v2505 = vsub.f32 %v86, %v2504
  %v2506 = vand.u32 %v2505, 4294901760
  %2507 = vmatpush1.msra.mxu0 %v2506
  %2508 = vmatprep.subr.mxu0 0.0
  %v2509 = vand.u32 %v85, 4294901760
  %v2510 = vsub.f32 %v85, %v2509
  %v2511 = vand.u32 %v2510, 4294901760
  %2512 = vmatpush1.msra.mxu0 %v2511
  %2513 = vmatprep.subr.mxu0 0.0
  %v2514 = vand.u32 %v116, 4294901760
  %v2515 = vsub.f32 %v116, %v2514
  %v2516 = vand.u32 %v2515, 4294901760
  %2517 = vmatpush2.msra.mxu0 %v2516
  %2518 = vmatprep.subr.mxu0 0.0
  %v2519 = vand.u32 %v115, 4294901760
  %v2520 = vsub.f32 %v115, %v2519
  %v2521 = vand.u32 %v2520, 4294901760
  %2522 = vmatpush2.msra.mxu0 %v2521
  %2523 = vmatprep.subr.mxu0 0.0
  %v2524 = vand.u32 %v114, 4294901760
  %v2525 = vsub.f32 %v114, %v2524
  %v2526 = vand.u32 %v2525, 4294901760
  %2527 = vmatpush2.msra.mxu0 %v2526
  %2528 = vmatprep.subr.mxu0 0.0
  %v2529 = vand.u32 %v113, 4294901760
  %v2530 = vsub.f32 %v113, %v2529
  %v2531 = vand.u32 %v2530, 4294901760
  %2532 = vmatpush2.msra.mxu0 %v2531
  %2533 = vmatprep.subr.mxu0 0.0
  %v2534 = vand.u32 %v112, 4294901760
  %v2535 = vsub.f32 %v112, %v2534
  %v2536 = vand.u32 %v2535, 4294901760
  %2537 = vmatpush2.msra.mxu0 %v2536
  %2538 = vmatprep.subr.mxu0 0.0
  %v2539 = vand.u32 %v111, 4294901760
  %v2540 = vsub.f32 %v111, %v2539
  %v2541 = vand.u32 %v2540, 4294901760
  %2542 = vmatpush2.msra.mxu0 %v2541
  %2543 = vmatprep.subr.mxu0 0.0
  %v2544 = vand.u32 %v110, 4294901760
  %v2545 = vsub.f32 %v110, %v2544
  %v2546 = vand.u32 %v2545, 4294901760
  %2547 = vmatpush2.msra.mxu0 %v2546
  %2548 = vmatprep.subr.mxu0 0.0
  %v2549 = vand.u32 %v109, 4294901760
  %v2550 = vsub.f32 %v109, %v2549
  %v2551 = vand.u32 %v2550, 4294901760
  %2552 = vmatpush2.msra.mxu0 %v2551
  %2553 = vmatprep.subr.mxu0 0.0
  %v2554 = vand.u32 %v108, 4294901760
  %v2555 = vsub.f32 %v108, %v2554
  %v2556 = vand.u32 %v2555, 4294901760
  %2557 = vmatpush2.msra.mxu0 %v2556
  %2558 = vmatprep.subr.mxu0 0.0
  %v2559 = vand.u32 %v107, 4294901760
  %v2560 = vsub.f32 %v107, %v2559
  %v2561 = vand.u32 %v2560, 4294901760
  %2562 = vmatpush2.msra.mxu0 %v2561
  %2563 = vmatprep.subr.mxu0 0.0
  %v2564 = vand.u32 %v106, 4294901760
  %v2565 = vsub.f32 %v106, %v2564
  %v2566 = vand.u32 %v2565, 4294901760
  %2567 = vmatpush2.msra.mxu0 %v2566
  %2568 = vmatprep.subr.mxu0 0.0
  %v2569 = vand.u32 %v105, 4294901760
  %v2570 = vsub.f32 %v105, %v2569
  %v2571 = vand.u32 %v2570, 4294901760
  %2572 = vmatpush2.msra.mxu0 %v2571
  %2573 = vmatprep.subr.mxu0 0.0
  %v2574 = vand.u32 %v104, 4294901760
  %v2575 = vsub.f32 %v104, %v2574
  %v2576 = vand.u32 %v2575, 4294901760
  %2577 = vmatpush2.msra.mxu0 %v2576
  %2578 = vmatprep.subr.mxu0 0.0
  %v2579 = vand.u32 %v103, 4294901760
  %v2580 = vsub.f32 %v103, %v2579
  %v2581 = vand.u32 %v2580, 4294901760
  %2582 = vmatpush2.msra.mxu0 %v2581
  %2583 = vmatprep.subr.mxu0 0.0
  %v2584 = vand.u32 %v102, 4294901760
  %v2585 = vsub.f32 %v102, %v2584
  %v2586 = vand.u32 %v2585, 4294901760
  %2587 = vmatpush2.msra.mxu0 %v2586
  %2588 = vmatprep.subr.mxu0 0.0
  %v2589 = vand.u32 %v101, 4294901760
  %v2590 = vsub.f32 %v101, %v2589
  %v2591 = vand.u32 %v2590, 4294901760
  %2592 = vmatpush2.msra.mxu0 %v2591
  %v2593 = vand.u32 %v20, 4294901760
  %2594 = vmatprep.mubr.f32.mxu0 %v2593
  %v2595 = vand.u32 %v19, 4294901760
  %2596 = vmatmul.mubr.f32.gmra.mxu0 %v2595
  %v2597 = vpop.f32.mrf.mxu0
  %v2598 = vadd.f32 %v2430, %v2597
  %v2599 = vpop.f32.mrf.mxu0
  %2600 = vdwg.mxu0
  %2601 = vmatprep.subr.mxu0 0.0
  %v2602 = vand.u32 %v100, 4294901760
  %2603 = vmatpush1.msra.mxu0 %v2602
  %2604 = vmatprep.subr.mxu0 0.0
  %v2605 = vand.u32 %v99, 4294901760
  %2606 = vmatpush1.msra.mxu0 %v2605
  %2607 = vmatprep.subr.mxu0 0.0
  %v2608 = vand.u32 %v98, 4294901760
  %2609 = vmatpush1.msra.mxu0 %v2608
  %2610 = vmatprep.subr.mxu0 0.0
  %v2611 = vand.u32 %v97, 4294901760
  %2612 = vmatpush1.msra.mxu0 %v2611
  %2613 = vmatprep.subr.mxu0 0.0
  %v2614 = vand.u32 %v96, 4294901760
  %2615 = vmatpush1.msra.mxu0 %v2614
  %2616 = vmatprep.subr.mxu0 0.0
  %v2617 = vand.u32 %v95, 4294901760
  %2618 = vmatpush1.msra.mxu0 %v2617
  %2619 = vmatprep.subr.mxu0 0.0
  %v2620 = vand.u32 %v94, 4294901760
  %2621 = vmatpush1.msra.mxu0 %v2620
  %2622 = vmatprep.subr.mxu0 0.0
  %v2623 = vand.u32 %v93, 4294901760
  %2624 = vmatpush1.msra.mxu0 %v2623
  %2625 = vmatprep.subr.mxu0 0.0
  %v2626 = vand.u32 %v92, 4294901760
  %2627 = vmatpush1.msra.mxu0 %v2626
  %2628 = vmatprep.subr.mxu0 0.0
  %v2629 = vand.u32 %v91, 4294901760
  %2630 = vmatpush1.msra.mxu0 %v2629
  %2631 = vmatprep.subr.mxu0 0.0
  %v2632 = vand.u32 %v90, 4294901760
  %2633 = vmatpush1.msra.mxu0 %v2632
  %2634 = vmatprep.subr.mxu0 0.0
  %v2635 = vand.u32 %v89, 4294901760
  %2636 = vmatpush1.msra.mxu0 %v2635
  %2637 = vmatprep.subr.mxu0 0.0
  %v2638 = vand.u32 %v88, 4294901760
  %2639 = vmatpush1.msra.mxu0 %v2638
  %2640 = vmatprep.subr.mxu0 0.0
  %v2641 = vand.u32 %v87, 4294901760
  %2642 = vmatpush1.msra.mxu0 %v2641
  %2643 = vmatprep.subr.mxu0 0.0
  %v2644 = vand.u32 %v86, 4294901760
  %2645 = vmatpush1.msra.mxu0 %v2644
  %2646 = vmatprep.subr.mxu0 0.0
  %v2647 = vand.u32 %v85, 4294901760
  %2648 = vmatpush1.msra.mxu0 %v2647
  %2649 = vmatprep.subr.mxu0 0.0
  %v2650 = vand.u32 %v116, 4294901760
  %2651 = vmatpush2.msra.mxu0 %v2650
  %2652 = vmatprep.subr.mxu0 0.0
  %v2653 = vand.u32 %v115, 4294901760
  %2654 = vmatpush2.msra.mxu0 %v2653
  %2655 = vmatprep.subr.mxu0 0.0
  %v2656 = vand.u32 %v114, 4294901760
  %2657 = vmatpush2.msra.mxu0 %v2656
  %2658 = vmatprep.subr.mxu0 0.0
  %v2659 = vand.u32 %v113, 4294901760
  %2660 = vmatpush2.msra.mxu0 %v2659
  %2661 = vmatprep.subr.mxu0 0.0
  %v2662 = vand.u32 %v112, 4294901760
  %2663 = vmatpush2.msra.mxu0 %v2662
  %2664 = vmatprep.subr.mxu0 0.0
  %v2665 = vand.u32 %v111, 4294901760
  %2666 = vmatpush2.msra.mxu0 %v2665
  %2667 = vmatprep.subr.mxu0 0.0
  %v2668 = vand.u32 %v110, 4294901760
  %2669 = vmatpush2.msra.mxu0 %v2668
  %2670 = vmatprep.subr.mxu0 0.0
  %v2671 = vand.u32 %v109, 4294901760
  %2672 = vmatpush2.msra.mxu0 %v2671
  %2673 = vmatprep.subr.mxu0 0.0
  %v2674 = vand.u32 %v108, 4294901760
  %2675 = vmatpush2.msra.mxu0 %v2674
  %2676 = vmatprep.subr.mxu0 0.0
  %v2677 = vand.u32 %v107, 4294901760
  %2678 = vmatpush2.msra.mxu0 %v2677
  %2679 = vmatprep.subr.mxu0 0.0
  %v2680 = vand.u32 %v106, 4294901760
  %2681 = vmatpush2.msra.mxu0 %v2680
  %2682 = vmatprep.subr.mxu0 0.0
  %v2683 = vand.u32 %v105, 4294901760
  %2684 = vmatpush2.msra.mxu0 %v2683
  %2685 = vmatprep.subr.mxu0 0.0
  %v2686 = vand.u32 %v104, 4294901760
  %2687 = vmatpush2.msra.mxu0 %v2686
  %2688 = vmatprep.subr.mxu0 0.0
  %v2689 = vand.u32 %v103, 4294901760
  %2690 = vmatpush2.msra.mxu0 %v2689
  %2691 = vmatprep.subr.mxu0 0.0
  %v2692 = vand.u32 %v102, 4294901760
  %2693 = vmatpush2.msra.mxu0 %v2692
  %2694 = vmatprep.subr.mxu0 0.0
  %v2695 = vand.u32 %v101, 4294901760
  %2696 = vmatpush2.msra.mxu0 %v2695
  %v2697 = vand.u32 %v20, 4294901760
  %2698 = vmatprep.mubr.f32.mxu0 %v2697
  %v2699 = vand.u32 %v19, 4294901760
  %2700 = vmatmul.mubr.f32.gmra.mxu0 %v2699
  %v2701 = vpop.f32.mrf.mxu0
  %v2702 = vadd.f32 %v2598, %v2701
  %v2703 = vpop.f32.mrf.mxu0
  %2704 = vdwg.mxu0
  %2705 = vst [vmem:[%s3] sm:$0xff] %v2702
  // Predicated region
  $region14: #{linear_forward.1} parent=0 // pred_check
    _
  $region15: #{linear_forward.1} parent=0 // pred_check_branch
    %2707 = sbr.rel (0) target = $region17
  $region16: #{linear_forward.1} parent=0 // pred_region
    _
  $region17: #{linear_forward.1} parent=0 // pred_fallthru
    _
  // Predicated region
  $region18: #{linear_forward.1} parent=0 // pred_check
    _
  $region19: #{linear_forward.1} parent=0 // pred_check_branch
    %2709 = sbr.rel (0) target = $region21
  $region20: #{linear_forward.1} parent=0 // pred_region
    _
  $region21: #{linear_forward.1} parent=0 // pred_fallthru
    _

</llo_original>
